<compile_context>
chip_gen: v5e
topology: v5e:2x2
jax: 0.10.0
libtpu: 0.0.40
codegen_flags: <defaults>
</compile_context>

<pallas_src>
import functools
import itertools

import jax
import jax.numpy as jnp
import numpy as np
from jax.experimental import pallas as pl
from jax.experimental.pallas import tpu as pltpu

# ---------------- deterministic JPEG constant tables ----------------
Y_TABLE_NP = np.array(
    [[16, 11, 10, 16, 24, 40, 51, 61],
     [12, 12, 14, 19, 26, 58, 60, 55],
     [14, 13, 16, 24, 40, 57, 69, 56],
     [14, 17, 22, 29, 51, 87, 80, 62],
     [18, 22, 37, 56, 68, 109, 103, 77],
     [24, 35, 55, 64, 81, 104, 113, 92],
     [49, 64, 78, 87, 103, 121, 120, 101],
     [72, 92, 95, 98, 112, 100, 103, 99]], dtype=np.float32)

C_TABLE_NP = np.full((8, 8), 99.0, dtype=np.float32)
C_TABLE_NP[:4, :4] = np.array(
    [[17, 18, 24, 47],
     [18, 21, 26, 66],
     [24, 26, 56, 99],
     [47, 66, 99, 99]], dtype=np.float32)

_alpha_vec = np.array([1.0 / np.sqrt(2)] + [1.0] * 7, dtype=np.float32)
ALPHA_NP = np.outer(_alpha_vec, _alpha_vec).astype(np.float32)

IDCT_TENSOR_NP = np.zeros((8, 8, 8, 8), dtype=np.float32)
for _x, _y, _u, _v in itertools.product(range(8), repeat=4):
    IDCT_TENSOR_NP[_x, _y, _u, _v] = (np.cos((2 * _u + 1) * _x * np.pi / 16) *
                                      np.cos((2 * _v + 1) * _y * np.pi / 16))


# ---------------- Pallas kernels ----------------
def _dequant_idct_kernel(y_ref, cb_ref, cr_ref, ty_ref, tc_ref,
                         yo_ref, cbo_ref, cro_ref):
    """One row-tile of dequantize+IDCT for all three channels.

    Quant table * factor * alpha * 0.25 are folded into ty/tc, so each channel
    is a single lane-dense MXU matmul plus the +128 level shift.
    """
    ty = ty_ref[...]
    tc = tc_ref[...]
    yo_ref[0] = jnp.dot(y_ref[0], ty, preferred_element_type=jnp.float32) + 128.0
    cbo_ref[0] = jnp.dot(cb_ref[0], tc, preferred_element_type=jnp.float32) + 128.0
    cro_ref[0] = jnp.dot(cr_ref[0], tc, preferred_element_type=jnp.float32) + 128.0


def _upsample_color_kernel(y_ref, cb_ref, cr_ref, er_ref, ec_ref, o_ref):
    """Fused chroma 2x upsample (exact NN via 0/1 expansion matmuls) + YCbCr->RGB."""
    y = y_ref[0]                        # (th, W)
    er = er_ref[...]                    # (th, th//2)  row duplication
    ec = ec_ref[...]                    # (W//2, W)    column duplication

    def up(c_ref):
        half = jnp.dot(er, c_ref[0], preferred_element_type=jnp.float32)
        return jnp.dot(half, ec, preferred_element_type=jnp.float32)

    cb = up(cb_ref) - 128.0
    cr = up(cr_ref) - 128.0
    r = y + 1.402 * cr
    g = y - 0.344136 * cb - 0.714136 * cr
    b = y + 1.772 * cb

    def clamp(v):
        return jnp.minimum(255.0, jnp.maximum(0.0, v)) * (1.0 / 255.0)

    o_ref[0, 0] = clamp(r)
    o_ref[0, 1] = clamp(g)
    o_ref[0, 2] = clamp(b)


# ---------------- pallas_call wrappers ----------------
def _pick_row_tile(total, target, step):
    """Largest tile <= target that divides `total` and is a multiple of `step`.
    Falls back to the full axis (always a legal block)."""
    if total <= target:
        return total
    t = (target // step) * step
    while t >= step:
        if total % t == 0:
            return t
        t -= step
    return total


def _fused_dequant_idct(y_p, cb_p, cr_p, t_y, t_c, tc_rows):
    B, Ry, L = y_p.shape
    _, Rc, _ = cb_p.shape
    ty_rows = 4 * tc_rows               # Y carries 4x the blocks of each chroma
    grid = (B, Rc // tc_rows)
    return pl.pallas_call(
        _dequant_idct_kernel,
        out_shape=(jax.ShapeDtypeStruct((B, Ry, L), jnp.float32),
                   jax.ShapeDtypeStruct((B, Rc, L), jnp.float32),
                   jax.ShapeDtypeStruct((B, Rc, L), jnp.float32)),
        grid=grid,
        in_specs=[
            pl.BlockSpec((1, ty_rows, L), lambda b, r: (b, r, 0)),
            pl.BlockSpec((1, tc_rows, L), lambda b, r: (b, r, 0)),
            pl.BlockSpec((1, tc_rows, L), lambda b, r: (b, r, 0)),
            pl.BlockSpec((L, L), lambda b, r: (0, 0)),   # VMEM-resident constant
            pl.BlockSpec((L, L), lambda b, r: (0, 0)),   # VMEM-resident constant
        ],
        out_specs=(
            pl.BlockSpec((1, ty_rows, L), lambda b, r: (b, r, 0)),
            pl.BlockSpec((1, tc_rows, L), lambda b, r: (b, r, 0)),
            pl.BlockSpec((1, tc_rows, L), lambda b, r: (b, r, 0)),
        ),
        compiler_params=pltpu.CompilerParams(
            dimension_semantics=("parallel", "parallel")),
    )(y_p, cb_p, cr_p, t_y, t_c)


def _upsample_color(y_img, cb_img, cr_img, er, ec, th):
    B, H, W = y_img.shape
    grid = (B, H // th)
    return pl.pallas_call(
        _upsample_color_kernel,
        out_shape=jax.ShapeDtypeStruct((B, 3, H, W), jnp.float32),
        grid=grid,
        in_specs=[
            pl.BlockSpec((1, th, W), lambda b, r: (b, r, 0)),
            pl.BlockSpec((1, th // 2, W // 2), lambda b, r: (b, r, 0)),
            pl.BlockSpec((1, th // 2, W // 2), lambda b, r: (b, r, 0)),
            pl.BlockSpec((th, th // 2), lambda b, r: (0, 0)),   # resident constant
            pl.BlockSpec((W // 2, W), lambda b, r: (0, 0)),     # resident constant
        ],
        out_specs=pl.BlockSpec((1, 3, th, W), lambda b, r: (b, 0, r, 0)),
        compiler_params=pltpu.CompilerParams(
            dimension_semantics=("parallel", "parallel")),
    )(y_img, cb_img, cr_img, er, ec)


# ---------------- JAX glue (layout plumbing only) ----------------
def block_merge(blocks, height, width):
    # blocks: (B, n_blocks, 8, 8) -> image (B, height, width)
    b = blocks.shape[0]
    x = blocks.reshape(b, height // 8, width // 8, 8, 8)
    x = jnp.transpose(x, (0, 1, 3, 2, 4))
    return x.reshape(b, height, width)


def _folded_idct_matrix(table, factor, pack):
    # (x * table*factor*alpha) @ T * 0.25 == x @ (0.25*diag(scale) @ T)  (exact)
    s = (table * factor * ALPHA_NP).reshape(64).astype(np.float32)
    t64 = (0.25 * s[:, None] * IDCT_TENSOR_NP.reshape(64, 64)).astype(np.float32)
    if pack == 1:
        return jnp.asarray(t64)
    t = np.zeros((64 * pack, 64 * pack), np.float32)
    for i in range(pack):
        t[64 * i:64 * (i + 1), 64 * i:64 * (i + 1)] = t64
    return jnp.asarray(t)


def decompress_jpeg(y, cb, cr, height, width, factor=1.0):
    B, Ny = y.shape[0], y.shape[1]
    Nc = cb.shape[1]
    assert Ny == 4 * Nc, "Y must carry 4x the blocks of each chroma channel"

    pack = 2 if Nc % 2 == 0 else 1      # lane-dense 128-wide rows when possible
    L = 64 * pack
    t_y = _folded_idct_matrix(Y_TABLE_NP, factor, pack)
    t_c = _folded_idct_matrix(C_TABLE_NP, factor, pack)

    # Pack `pack` consecutive 8x8 blocks per row (free row-major reshape).
    y_p = y.reshape(B, Ny // pack, L)
    cb_p = cb.reshape(B, Nc // pack, L)
    cr_p = cr.reshape(B, Nc // pack, L)

    # Chroma row-tile (Y tile = 4x rows).  ~512 rows x 128 lanes x f32 keeps the
    # double-buffered working set at a few MiB: fits v7x's 64 MiB VMEM and the
    # v5e/v6e scoped-VMEM defaults while amortising per-step overhead.
    tc_rows = _pick_row_tile(Nc // pack, target=512, step=8)
    yo, cbo, cro = _fused_dequant_idct(y_p, cb_p, cr_p, t_y, t_c, tc_rows)

    # Block merge (layout permutation) — kept in XLA, see TODO at top of file.
    y_img = block_merge(yo.reshape(B, Ny, 8, 8), height, width)
    cb_img = block_merge(cbo.reshape(B, Nc, 8, 8), height // 2, width // 2)
    cr_img = block_merge(cro.reshape(B, Nc, 8, 8), height // 2, width // 2)

    # Fused chroma upsample + YCbCr->RGB, tiled over image rows.
    th = _pick_row_tile(height, target=128, step=16)
    er = np.zeros((th, th // 2), np.float32)
    er[np.arange(th), np.arange(th) // 2] = 1.0
    ec = np.zeros((width // 2, width), np.float32)
    ec[np.arange(width) // 2, np.arange(width)] = 1.0
    return _upsample_color(y_img, cb_img, cr_img,
                           jnp.asarray(er), jnp.asarray(ec), th)


# ---------------- pure-JAX reference (mirrors the PyTorch forward) ----------------
def reference_decompress(y, cb, cr, height, width, factor=1.0):
    alpha = jnp.asarray(ALPHA_NP)
    tensor = jnp.asarray(IDCT_TENSOR_NP)

    def dequant_idct_merge(comp, table, h, w):
        comp = comp * (jnp.asarray(table) * factor)
        comp = comp * alpha
        comp = 0.25 * jnp.tensordot(comp, tensor, axes=2) + 128.0
        b = comp.shape[0]
        return comp.reshape(b, h // 8, w // 8, 8, 8).transpose(0, 1, 3, 2, 4).reshape(b, h, w)

    y_img = dequant_idct_merge(y, Y_TABLE_NP, height, width)
    cb_img = dequant_idct_merge(cb, C_TABLE_NP, height // 2, width // 2)
    cr_img = dequant_idct_merge(cr, C_TABLE_NP, height // 2, width // 2)

    def up(x):  # exact translation of the torch unsqueeze/repeat/view trick
        b, h, w = x.shape
        return jnp.tile(x[..., None], (1, 1, 2, 2)).reshape(b, h * 2, w * 2)

    img = jnp.stack([y_img, up(cb_img), up(cr_img)], axis=-1)      # (B, H, W, 3)
    shift = jnp.array([0.0, -128.0, -128.0], jnp.float32)
    matrix = jnp.array([[1.0, 0.0, 1.402],
                        [1.0, -0.344136, -0.714136],
                        [1.0, 1.772, 0.0]], jnp.float32).T
    res = jnp.tensordot(img + shift, matrix, axes=1)
    res = jnp.transpose(res, (0, 3, 1, 2))                         # NCHW
    res = jnp.minimum(255.0, jnp.maximum(0.0, res))
    return res / 255.0


if __name__ == "__main__":
    key = jax.random.PRNGKey(0)
    B, H, W = 2, 32, 32
    ky, kcb, kcr = jax.random.split(key, 3)
    n_y = (H // 8) * (W // 8)
    n_c = (H // 16) * (W // 16)
    y = jax.random.normal(ky, (B, n_y, 8, 8), jnp.float32) * 5.0
    cb = jax.random.normal(kcb, (B, n_c, 8, 8), jnp.float32) * 5.0
    cr = jax.random.normal(kcr, (B, n_c, 8, 8), jnp.float32) * 5.0

    run = jax.jit(functools.partial(decompress_jpeg, height=H, width=W, factor=1.0))
    out = jax.block_until_ready(run(y, cb, cr))

    ref = reference_decompress(y, cb, cr, H, W, factor=1.0)
    np.testing.assert_allclose(np.asarray(out), np.asarray(ref), rtol=2e-4, atol=2e-4)
    assert out.shape == (B, 3, H, W) and out.dtype == jnp.float32

    print("KERNEL_OK")
</pallas_src>

<mosaic_0001>
module attributes {stable_mosaic.version = 11 : i64} {
  func.func @_dequant_idct_kernel(%arg0: i32, %arg1: i32, %arg2: memref<1x8x128xf32, #tpu.memory_space<vmem>>, %arg3: memref<1x2x128xf32, #tpu.memory_space<vmem>>, %arg4: memref<1x2x128xf32, #tpu.memory_space<vmem>>, %arg5: memref<128x128xf32, #tpu.memory_space<vmem>>, %arg6: memref<128x128xf32, #tpu.memory_space<vmem>>, %arg7: memref<1x8x128xf32, #tpu.memory_space<vmem>>, %arg8: memref<1x2x128xf32, #tpu.memory_space<vmem>>, %arg9: memref<1x2x128xf32, #tpu.memory_space<vmem>>) attributes {dimension_semantics = [#tpu.dimension_semantics<parallel>, #tpu.dimension_semantics<parallel>], iteration_bounds = array<i64: 2, 1>, scalar_prefetch = 0 : i64, scratch_operands = 0 : i64, tpu.core_type = #tpu.core_type<tc>, window_params = [{transform_indices = @transform_0, window_bounds = array<i64: 1, 8, 128>}, {transform_indices = @transform_1, window_bounds = array<i64: 1, 2, 128>}, {transform_indices = @transform_2, window_bounds = array<i64: 1, 2, 128>}, {pipeline_mode = #tpu.pipeline_mode<synchronous>, transform_indices = @transform_3, window_bounds = array<i64: 128, 128>}, {pipeline_mode = #tpu.pipeline_mode<synchronous>, transform_indices = @transform_4, window_bounds = array<i64: 128, 128>}, {transform_indices = @transform_5, window_bounds = array<i64: 1, 8, 128>}, {transform_indices = @transform_6, window_bounds = array<i64: 1, 2, 128>}, {transform_indices = @transform_7, window_bounds = array<i64: 1, 2, 128>}]} {
    %c0 = arith.constant 0 : index
    %c0_0 = arith.constant 0 : index
    %0 = vector.load %arg5[%c0, %c0_0] : memref<128x128xf32, #tpu.memory_space<vmem>>, vector<128x128xf32>
    %c0_1 = arith.constant 0 : index
    %c0_2 = arith.constant 0 : index
    %1 = vector.load %arg6[%c0_1, %c0_2] : memref<128x128xf32, #tpu.memory_space<vmem>>, vector<128x128xf32>
    %c0_3 = arith.constant 0 : index
    %c0_4 = arith.constant 0 : index
    %c0_5 = arith.constant 0 : index
    %2 = vector.load %arg2[%c0_3, %c0_4, %c0_5] : memref<1x8x128xf32, #tpu.memory_space<vmem>>, vector<1x8x128xf32>
    %3 = vector.shape_cast %2 : vector<1x8x128xf32> to vector<8x128xf32>
    %cst = arith.constant dense<0.000000e+00> : vector<8x128xf32>
    %4 = tpu.matmul %3, %0, %cst {dimension_numbers = #tpu.dot_dimension_numbers<[1], [0], [0], [1], [0, 0, 1, 1], [], []>} : vector<8x128xf32>, vector<128x128xf32>, vector<8x128xf32> -> vector<8x128xf32>
    %cst_6 = arith.constant 1.280000e+02 : f32
    %5 = vector.broadcast %cst_6 : f32 to vector<8x128xf32>
    %6 = arith.addf %4, %5 : vector<8x128xf32>
    %c0_7 = arith.constant 0 : index
    %c0_8 = arith.constant 0 : index
    %c0_9 = arith.constant 0 : index
    %7 = vector.load %arg7[%c0_7, %c0_8, %c0_9] : memref<1x8x128xf32, #tpu.memory_space<vmem>>, vector<1x8x128xf32>
    %8 = vector.shape_cast %7 : vector<1x8x128xf32> to vector<8x128xf32>
    %9 = vector.shape_cast %6 : vector<8x128xf32> to vector<1x8x128xf32>
    tpu.vector_store %arg7[%c0_7, %c0_8, %c0_9], %9 {strides = array<i32>} : memref<1x8x128xf32, #tpu.memory_space<vmem>>, vector<1x8x128xf32>,
    %c0_10 = arith.constant 0 : index
    %c0_11 = arith.constant 0 : index
    %c0_12 = arith.constant 0 : index
    %10 = vector.load %arg3[%c0_10, %c0_11, %c0_12] : memref<1x2x128xf32, #tpu.memory_space<vmem>>, vector<1x2x128xf32>
    %11 = vector.shape_cast %10 : vector<1x2x128xf32> to vector<2x128xf32>
    %cst_13 = arith.constant dense<0.000000e+00> : vector<2x128xf32>
    %12 = tpu.matmul %11, %1, %cst_13 {dimension_numbers = #tpu.dot_dimension_numbers<[1], [0], [0], [1], [0, 0, 1, 1], [], []>} : vector<2x128xf32>, vector<128x128xf32>, vector<2x128xf32> -> vector<2x128xf32>
    %cst_14 = arith.constant 1.280000e+02 : f32
    %13 = vector.broadcast %cst_14 : f32 to vector<2x128xf32>
    %14 = arith.addf %12, %13 : vector<2x128xf32>
    %c0_15 = arith.constant 0 : index
    %c0_16 = arith.constant 0 : index
    %c0_17 = arith.constant 0 : index
    %15 = vector.load %arg8[%c0_15, %c0_16, %c0_17] : memref<1x2x128xf32, #tpu.memory_space<vmem>>, vector<1x2x128xf32>
    %16 = vector.shape_cast %15 : vector<1x2x128xf32> to vector<2x128xf32>
    %17 = vector.shape_cast %14 : vector<2x128xf32> to vector<1x2x128xf32>
    tpu.vector_store %arg8[%c0_15, %c0_16, %c0_17], %17 {strides = array<i32>} : memref<1x2x128xf32, #tpu.memory_space<vmem>>, vector<1x2x128xf32>,
    %c0_18 = arith.constant 0 : index
    %c0_19 = arith.constant 0 : index
    %c0_20 = arith.constant 0 : index
    %18 = vector.load %arg4[%c0_18, %c0_19, %c0_20] : memref<1x2x128xf32, #tpu.memory_space<vmem>>, vector<1x2x128xf32>
    %19 = vector.shape_cast %18 : vector<1x2x128xf32> to vector<2x128xf32>
    %cst_21 = arith.constant dense<0.000000e+00> : vector<2x128xf32>
    %20 = tpu.matmul %19, %1, %cst_21 {dimension_numbers = #tpu.dot_dimension_numbers<[1], [0], [0], [1], [0, 0, 1, 1], [], []>} : vector<2x128xf32>, vector<128x128xf32>, vector<2x128xf32> -> vector<2x128xf32>
    %cst_22 = arith.constant 1.280000e+02 : f32
    %21 = vector.broadcast %cst_22 : f32 to vector<2x128xf32>
    %22 = arith.addf %20, %21 : vector<2x128xf32>
    %c0_23 = arith.constant 0 : index
    %c0_24 = arith.constant 0 : index
    %c0_25 = arith.constant 0 : index
    %23 = vector.load %arg9[%c0_23, %c0_24, %c0_25] : memref<1x2x128xf32, #tpu.memory_space<vmem>>, vector<1x2x128xf32>
    %24 = vector.shape_cast %23 : vector<1x2x128xf32> to vector<2x128xf32>
    %25 = vector.shape_cast %22 : vector<2x128xf32> to vector<1x2x128xf32>
    tpu.vector_store %arg9[%c0_23, %c0_24, %c0_25], %25 {strides = array<i32>} : memref<1x2x128xf32, #tpu.memory_space<vmem>>, vector<1x2x128xf32>,
    return
  }
  func.func @transform_0(%arg0: i32, %arg1: i32) -> (i32, i32, i32) {
    %c0_i32 = arith.constant 0 : i32
    %c0_i32_0 = arith.constant 0 : i32
    return %arg0, %arg1, %c0_i32 : i32, i32, i32
  }
  func.func @transform_1(%arg0: i32, %arg1: i32) -> (i32, i32, i32) {
    %c0_i32 = arith.constant 0 : i32
    %c0_i32_0 = arith.constant 0 : i32
    return %arg0, %arg1, %c0_i32 : i32, i32, i32
  }
  func.func @transform_2(%arg0: i32, %arg1: i32) -> (i32, i32, i32) {
    %c0_i32 = arith.constant 0 : i32
    %c0_i32_0 = arith.constant 0 : i32
    return %arg0, %arg1, %c0_i32 : i32, i32, i32
  }
  func.func @transform_3(%arg0: i32, %arg1: i32) -> (i32, i32) {
    %c0_i32 = arith.constant 0 : i32
    %c0_i32_0 = arith.constant 0 : i32
    %c0_i32_1 = arith.constant 0 : i32
    return %c0_i32, %c0_i32_0 : i32, i32
  }
  func.func @transform_4(%arg0: i32, %arg1: i32) -> (i32, i32) {
    %c0_i32 = arith.constant 0 : i32
    %c0_i32_0 = arith.constant 0 : i32
    %c0_i32_1 = arith.constant 0 : i32
    return %c0_i32, %c0_i32_0 : i32, i32
  }
  func.func @transform_5(%arg0: i32, %arg1: i32) -> (i32, i32, i32) {
    %c0_i32 = arith.constant 0 : i32
    %c0_i32_0 = arith.constant 0 : i32
    return %arg0, %arg1, %c0_i32 : i32, i32, i32
  }
  func.func @transform_6(%arg0: i32, %arg1: i32) -> (i32, i32, i32) {
    %c0_i32 = arith.constant 0 : i32
    %c0_i32_0 = arith.constant 0 : i32
    return %arg0, %arg1, %c0_i32 : i32, i32, i32
  }
  func.func @transform_7(%arg0: i32, %arg1: i32) -> (i32, i32, i32) {
    %c0_i32 = arith.constant 0 : i32
    %c0_i32_0 = arith.constant 0 : i32
    return %arg0, %arg1, %c0_i32 : i32, i32, i32
  }
}

module attributes {stable_mosaic.version = 11 : i64} {
  func.func @_upsample_color_kernel(%arg0: i32, %arg1: i32, %arg2: memref<1x32x32xf32, #tpu.memory_space<vmem>>, %arg3: memref<1x16x16xf32, #tpu.memory_space<vmem>>, %arg4: memref<1x16x16xf32, #tpu.memory_space<vmem>>, %arg5: memref<32x16xf32, #tpu.memory_space<vmem>>, %arg6: memref<16x32xf32, #tpu.memory_space<vmem>>, %arg7: memref<1x3x32x32xf32, #tpu.memory_space<vmem>>) attributes {dimension_semantics = [#tpu.dimension_semantics<parallel>, #tpu.dimension_semantics<parallel>], iteration_bounds = array<i64: 2, 1>, scalar_prefetch = 0 : i64, scratch_operands = 0 : i64, tpu.core_type = #tpu.core_type<tc>, window_params = [{transform_indices = @transform_0, window_bounds = array<i64: 1, 32, 32>}, {transform_indices = @transform_1, window_bounds = array<i64: 1, 16, 16>}, {transform_indices = @transform_2, window_bounds = array<i64: 1, 16, 16>}, {pipeline_mode = #tpu.pipeline_mode<synchronous>, transform_indices = @transform_3, window_bounds = array<i64: 32, 16>}, {pipeline_mode = #tpu.pipeline_mode<synchronous>, transform_indices = @transform_4, window_bounds = array<i64: 16, 32>}, {transform_indices = @transform_5, window_bounds = array<i64: 1, 3, 32, 32>}]} {
    %c0 = arith.constant 0 : index
    %c0_0 = arith.constant 0 : index
    %c0_1 = arith.constant 0 : index
    %0 = vector.load %arg2[%c0, %c0_0, %c0_1] : memref<1x32x32xf32, #tpu.memory_space<vmem>>, vector<1x32x32xf32>
    %1 = vector.shape_cast %0 : vector<1x32x32xf32> to vector<32x32xf32>
    %c0_2 = arith.constant 0 : index
    %c0_3 = arith.constant 0 : index
    %2 = vector.load %arg5[%c0_2, %c0_3] : memref<32x16xf32, #tpu.memory_space<vmem>>, vector<32x16xf32>
    %c0_4 = arith.constant 0 : index
    %c0_5 = arith.constant 0 : index
    %3 = vector.load %arg6[%c0_4, %c0_5] : memref<16x32xf32, #tpu.memory_space<vmem>>, vector<16x32xf32>
    %c0_6 = arith.constant 0 : index
    %c0_7 = arith.constant 0 : index
    %c0_8 = arith.constant 0 : index
    %4 = vector.load %arg3[%c0_6, %c0_7, %c0_8] : memref<1x16x16xf32, #tpu.memory_space<vmem>>, vector<1x16x16xf32>
    %5 = vector.shape_cast %4 : vector<1x16x16xf32> to vector<16x16xf32>
    %cst = arith.constant dense<0.000000e+00> : vector<32x16xf32>
    %6 = tpu.matmul %2, %5, %cst {dimension_numbers = #tpu.dot_dimension_numbers<[1], [0], [0], [1], [0, 0, 1, 1], [], []>} : vector<32x16xf32>, vector<16x16xf32>, vector<32x16xf32> -> vector<32x16xf32>
    %cst_9 = arith.constant dense<0.000000e+00> : vector<32x32xf32>
    %7 = tpu.matmul %6, %3, %cst_9 {dimension_numbers = #tpu.dot_dimension_numbers<[1], [0], [0], [1], [0, 0, 1, 1], [], []>} : vector<32x16xf32>, vector<16x32xf32>, vector<32x32xf32> -> vector<32x32xf32>
    %cst_10 = arith.constant 1.280000e+02 : f32
    %8 = vector.broadcast %cst_10 : f32 to vector<32x32xf32>
    %9 = arith.subf %7, %8 : vector<32x32xf32>
    %c0_11 = arith.constant 0 : index
    %c0_12 = arith.constant 0 : index
    %c0_13 = arith.constant 0 : index
    %10 = vector.load %arg4[%c0_11, %c0_12, %c0_13] : memref<1x16x16xf32, #tpu.memory_space<vmem>>, vector<1x16x16xf32>
    %11 = vector.shape_cast %10 : vector<1x16x16xf32> to vector<16x16xf32>
    %cst_14 = arith.constant dense<0.000000e+00> : vector<32x16xf32>
    %12 = tpu.matmul %2, %11, %cst_14 {dimension_numbers = #tpu.dot_dimension_numbers<[1], [0], [0], [1], [0, 0, 1, 1], [], []>} : vector<32x16xf32>, vector<16x16xf32>, vector<32x16xf32> -> vector<32x16xf32>
    %cst_15 = arith.constant dense<0.000000e+00> : vector<32x32xf32>
    %13 = tpu.matmul %12, %3, %cst_15 {dimension_numbers = #tpu.dot_dimension_numbers<[1], [0], [0], [1], [0, 0, 1, 1], [], []>} : vector<32x16xf32>, vector<16x32xf32>, vector<32x32xf32> -> vector<32x32xf32>
    %cst_16 = arith.constant 1.280000e+02 : f32
    %14 = vector.broadcast %cst_16 : f32 to vector<32x32xf32>
    %15 = arith.subf %13, %14 : vector<32x32xf32>
    %cst_17 = arith.constant 1.402000e+00 : f32
    %16 = vector.broadcast %cst_17 : f32 to vector<32x32xf32>
    %17 = arith.mulf %16, %15 : vector<32x32xf32>
    %18 = arith.addf %1, %17 : vector<32x32xf32>
    %cst_18 = arith.constant 3.441360e-01 : f32
    %19 = vector.broadcast %cst_18 : f32 to vector<32x32xf32>
    %20 = arith.mulf %19, %9 : vector<32x32xf32>
    %21 = arith.subf %1, %20 : vector<32x32xf32>
    %cst_19 = arith.constant 7.141360e-01 : f32
    %22 = vector.broadcast %cst_19 : f32 to vector<32x32xf32>
    %23 = arith.mulf %22, %15 : vector<32x32xf32>
    %24 = arith.subf %21, %23 : vector<32x32xf32>
    %cst_20 = arith.constant 1.772000e+00 : f32
    %25 = vector.broadcast %cst_20 : f32 to vector<32x32xf32>
    %26 = arith.mulf %25, %9 : vector<32x32xf32>
    %27 = arith.addf %1, %26 : vector<32x32xf32>
    %cst_21 = arith.constant 0.000000e+00 : f32
    %28 = vector.broadcast %cst_21 : f32 to vector<32x32xf32>
    %29 = arith.maximumf %28, %18 : vector<32x32xf32>
    %cst_22 = arith.constant 2.550000e+02 : f32
    %30 = vector.broadcast %cst_22 : f32 to vector<32x32xf32>
    %31 = arith.minimumf %30, %29 : vector<32x32xf32>
    %cst_23 = arith.constant 0.00392156886 : f32
    %32 = vector.broadcast %cst_23 : f32 to vector<32x32xf32>
    %33 = arith.mulf %31, %32 : vector<32x32xf32>
    %c0_24 = arith.constant 0 : index
    %c0_25 = arith.constant 0 : index
    %c0_26 = arith.constant 0 : index
    %c0_27 = arith.constant 0 : index
    %34 = vector.load %arg7[%c0_24, %c0_25, %c0_26, %c0_27] : memref<1x3x32x32xf32, #tpu.memory_space<vmem>>, vector<1x1x32x32xf32>
    %35 = vector.shape_cast %34 : vector<1x1x32x32xf32> to vector<32x32xf32>
    %36 = vector.shape_cast %33 : vector<32x32xf32> to vector<1x1x32x32xf32>
    tpu.vector_store %arg7[%c0_24, %c0_25, %c0_26, %c0_27], %36 {strides = array<i32>} : memref<1x3x32x32xf32, #tpu.memory_space<vmem>>, vector<1x1x32x32xf32>,
    %cst_28 = arith.constant 0.000000e+00 : f32
    %37 = vector.broadcast %cst_28 : f32 to vector<32x32xf32>
    %38 = arith.maximumf %37, %24 : vector<32x32xf32>
    %cst_29 = arith.constant 2.550000e+02 : f32
    %39 = vector.broadcast %cst_29 : f32 to vector<32x32xf32>
    %40 = arith.minimumf %39, %38 : vector<32x32xf32>
    %cst_30 = arith.constant 0.00392156886 : f32
    %41 = vector.broadcast %cst_30 : f32 to vector<32x32xf32>
    %42 = arith.mulf %40, %41 : vector<32x32xf32>
    %c0_31 = arith.constant 0 : index
    %c1 = arith.constant 1 : index
    %c0_32 = arith.constant 0 : index
    %c0_33 = arith.constant 0 : index
    %43 = vector.load %arg7[%c0_31, %c1, %c0_32, %c0_33] : memref<1x3x32x32xf32, #tpu.memory_space<vmem>>, vector<1x1x32x32xf32>
    %44 = vector.shape_cast %43 : vector<1x1x32x32xf32> to vector<32x32xf32>
    %45 = vector.shape_cast %42 : vector<32x32xf32> to vector<1x1x32x32xf32>
    tpu.vector_store %arg7[%c0_31, %c1, %c0_32, %c0_33], %45 {strides = array<i32>} : memref<1x3x32x32xf32, #tpu.memory_space<vmem>>, vector<1x1x32x32xf32>,
    %cst_34 = arith.constant 0.000000e+00 : f32
    %46 = vector.broadcast %cst_34 : f32 to vector<32x32xf32>
    %47 = arith.maximumf %46, %27 : vector<32x32xf32>
    %cst_35 = arith.constant 2.550000e+02 : f32
    %48 = vector.broadcast %cst_35 : f32 to vector<32x32xf32>
    %49 = arith.minimumf %48, %47 : vector<32x32xf32>
    %cst_36 = arith.constant 0.00392156886 : f32
    %50 = vector.broadcast %cst_36 : f32 to vector<32x32xf32>
    %51 = arith.mulf %49, %50 : vector<32x32xf32>
    %c0_37 = arith.constant 0 : index
    %c2 = arith.constant 2 : index
    %c0_38 = arith.constant 0 : index
    %c0_39 = arith.constant 0 : index
    %52 = vector.load %arg7[%c0_37, %c2, %c0_38, %c0_39] : memref<1x3x32x32xf32, #tpu.memory_space<vmem>>, vector<1x1x32x32xf32>
    %53 = vector.shape_cast %52 : vector<1x1x32x32xf32> to vector<32x32xf32>
    %54 = vector.shape_cast %51 : vector<32x32xf32> to vector<1x1x32x32xf32>
    tpu.vector_store %arg7[%c0_37, %c2, %c0_38, %c0_39], %54 {strides = array<i32>} : memref<1x3x32x32xf32, #tpu.memory_space<vmem>>, vector<1x1x32x32xf32>,
    return
  }
  func.func @transform_0(%arg0: i32, %arg1: i32) -> (i32, i32, i32) {
    %c0_i32 = arith.constant 0 : i32
    %c0_i32_0 = arith.constant 0 : i32
    return %arg0, %arg1, %c0_i32 : i32, i32, i32
  }
  func.func @transform_1(%arg0: i32, %arg1: i32) -> (i32, i32, i32) {
    %c0_i32 = arith.constant 0 : i32
    %c0_i32_0 = arith.constant 0 : i32
    return %arg0, %arg1, %c0_i32 : i32, i32, i32
  }
  func.func @transform_2(%arg0: i32, %arg1: i32) -> (i32, i32, i32) {
    %c0_i32 = arith.constant 0 : i32
    %c0_i32_0 = arith.constant 0 : i32
    return %arg0, %arg1, %c0_i32 : i32, i32, i32
  }
  func.func @transform_3(%arg0: i32, %arg1: i32) -> (i32, i32) {
    %c0_i32 = arith.constant 0 : i32
    %c0_i32_0 = arith.constant 0 : i32
    %c0_i32_1 = arith.constant 0 : i32
    return %c0_i32, %c0_i32_0 : i32, i32
  }
  func.func @transform_4(%arg0: i32, %arg1: i32) -> (i32, i32) {
    %c0_i32 = arith.constant 0 : i32
    %c0_i32_0 = arith.constant 0 : i32
    %c0_i32_1 = arith.constant 0 : i32
    return %c0_i32, %c0_i32_0 : i32, i32
  }
  func.func @transform_5(%arg0: i32, %arg1: i32) -> (i32, i32, i32, i32) {
    %c0_i32 = arith.constant 0 : i32
    %c0_i32_0 = arith.constant 0 : i32
    %c0_i32_1 = arith.constant 0 : i32
    return %arg0, %c0_i32, %arg1, %c0_i32_0 : i32, i32, i32, i32
  }
}

</mosaic_0001>

<llo_original>
// kernel: decompress_jpeg.3
$region0: #{decompress_jpeg.3}
  #allocation0 [shape = 'u32[]', space=smem, size = 0x4, offset = 0x4, fixed_abs, tag = 'smem constant byte address 0x4 - core index']
  #allocation1 [shape = 'u32[72,128]{1,0:T(1,128)}', space=vmem, size = 0x9000, scoped, tag = 'internal scratch']
  %s0 = inlined_call_operand.vmem [shape: f32[2,32,32], index: 0, kind: input, shape index: {}]
  %s1 = inlined_call_operand.vmem [shape: f32[2,16,16], index: 1, kind: input, shape index: {}]
  %s2 = inlined_call_operand.vmem [shape: f32[2,16,16], index: 2, kind: input, shape index: {}]
  %s3 = inlined_call_operand.vmem [shape: f32[32,16], index: 3, kind: input, shape index: {}]
  %s4 = inlined_call_operand.vmem [shape: f32[16,32], index: 4, kind: input, shape index: {}]
  %s5 = inlined_call_operand.hbm [shape: f32[2,3,32,32], index: 5, kind: output, shape index: {}]
  %s6 = sld [smem:[#allocation0]]
  $region53: #{decompress_jpeg.3} parent=0
    _
  %s8 = ssub.s32 1, %s6
  %s9 = scalar_select 0, %s8, %s6
  $region1: #{decompress_jpeg.3} parent=0
    #allocation2 [shape = 'u8[98304]{0}', space=vmem, size = 0x18000, scoped, tag = 'output window, operand 0']
    #allocation3 [shape = 's32[2]{0}', space=sflag, size = 0x8, scoped, tag = 'scoped memory for decompress_jpeg.3']
    %10 = vsyncpa [#allocation3], 0
    %s11 = scalar_lea.sflag [#allocation3], 1
    %12 = vsyncpa %s11, 0
    loop: start=0, step=1, limit=4
    $region2: #{decompress_jpeg.3} parent=1 // loop_pre_header
      _
    $region3: #{decompress_jpeg.3} parent=1 // loop_header
      %s14 = sphi 0, %s18
      %p15 = scmp.ge.s32.totalorder %s14, 4
      %s21 = sphi 0, %s33
      %s22 = sphi 0, %s29
      %s23 = sphi 0, %s21
      %s24 = sphi 0, %s22
      %s25 = sphi 0, %s23
      %s26 = sphi 0, %s24
      %s38 = sphi 0, %s40
      %s41 = sphi 0, %s38
      %s42 = sphi 0, %s41
      %s58 = sphi 0, %s42
      %s66 = sphi 0, %s68
      %s69 = sphi 0, %s66
      %s70 = sphi 0, %s69
      %s86 = sphi 0, %s70
      %s94 = sphi 0, %s96
      %s97 = sphi 0, %s94
      %s98 = sphi 0, %s97
      %s114 = sphi 0, %s98
      %s118 = sphi 0, %s118
      %s120 = sphi 0, %s118
      %s121 = sphi 0, %s120
      %s135 = sphi 0, %s121
      %s139 = sphi 0, %s139
      %s141 = sphi 0, %s139
      %s142 = sphi 0, %s141
      %s156 = sphi 0, %s142
      %s164 = sphi 0, %s166
      %s167 = sphi 0, %s164
      %s168 = sphi 0, %s167
      %s184 = sphi 0, %s168
    $region4: #{decompress_jpeg.3} parent=1 // loop_header_branch
      %17 = sbr.rel (%p15) target = $region8
    $region5: #{decompress_jpeg.3} parent=1 // loop_body
      %s19 = ssub.s32 %s14, 1
      %s20 = ssub.s32 %s14, 2
      %s27 = sadd.s32 1, %s22
      %p28 = scmp.ge.s32.totalorder %s27, 1
      %s29 = scalar_select %p28, 0, %s27
      %s30 = sadd.s32 1, %s21
      %s31 = scalar_select %p28, %s30, %s21
      %p32 = scmp.ge.s32.totalorder %s31, 2
      %s33 = scalar_select %p32, 0, %s31
      %s34 = ssub.s32 %s21, %s33
      %s35 = ssub.s32 %s22, %s29
      %s36 = sor.u32 %s34, %s35
      %p37 = scmp.eq.s32.totalorder %s36, 0
      %s39 = sadd.s32 %s38, 1
      %s40 = scalar_select %p37, %s38, %s39
      %p43 = pneg %p37
      %p44 = scmp.eq.s32.totalorder %s14, 1
      %p45 = por %p43, %p44
      %p46 = scmp.ne.s32.totalorder %s38, %s41
      %p47 = scmp.eq.s32.totalorder %s14, 0
      %p48 = por %p46, %p47
      %p49 = scmp.ne.s32.totalorder %s38, %s41
      %p50 = scmp.eq.s32.totalorder %s19, 1
      %p51 = por %p49, %p50
      %p52 = scmp.ne.s32.totalorder %s41, %s42
      %p53 = scmp.eq.s32.totalorder %s19, 0
      %p54 = por %p52, %p53
      %p55 = scmp.ne.s32.totalorder %s41, %s42
      %p56 = scmp.eq.s32.totalorder %s20, 1
      %p57 = por %p55, %p56
      %p59 = scmp.ne.s32.totalorder %s42, %s58
      %p60 = scmp.eq.s32.totalorder %s20, 0
      %p61 = por %p59, %p60
      %s62 = ssub.s32 %s21, %s33
      %s63 = ssub.s32 %s22, %s29
      %s64 = sor.u32 %s62, %s63
      %p65 = scmp.eq.s32.totalorder %s64, 0
      %s67 = sadd.s32 %s66, 1
      %s68 = scalar_select %p65, %s66, %s67
      %p71 = pneg %p65
      %p72 = scmp.eq.s32.totalorder %s14, 1
      %p73 = por %p71, %p72
      %p74 = scmp.ne.s32.totalorder %s66, %s69
      %p75 = scmp.eq.s32.totalorder %s14, 0
      %p76 = por %p74, %p75
      %p77 = scmp.ne.s32.totalorder %s66, %s69
      %p78 = scmp.eq.s32.totalorder %s19, 1
      %p79 = por %p77, %p78
      %p80 = scmp.ne.s32.totalorder %s69, %s70
      %p81 = scmp.eq.s32.totalorder %s19, 0
      %p82 = por %p80, %p81
      %p83 = scmp.ne.s32.totalorder %s69, %s70
      %p84 = scmp.eq.s32.totalorder %s20, 1
      %p85 = por %p83, %p84
      %p87 = scmp.ne.s32.totalorder %s70, %s86
      %p88 = scmp.eq.s32.totalorder %s20, 0
      %p89 = por %p87, %p88
      %s90 = ssub.s32 %s21, %s33
      %s91 = ssub.s32 %s22, %s29
      %s92 = sor.u32 %s90, %s91
      %p93 = scmp.eq.s32.totalorder %s92, 0
      %s95 = sadd.s32 %s94, 1
      %s96 = scalar_select %p93, %s94, %s95
      %p99 = pneg %p93
      %p100 = scmp.eq.s32.totalorder %s14, 1
      %p101 = por %p99, %p100
      %p102 = scmp.ne.s32.totalorder %s94, %s97
      %p103 = scmp.eq.s32.totalorder %s14, 0
      %p104 = por %p102, %p103
      %p105 = scmp.ne.s32.totalorder %s94, %s97
      %p106 = scmp.eq.s32.totalorder %s19, 1
      %p107 = por %p105, %p106
      %p108 = scmp.ne.s32.totalorder %s97, %s98
      %p109 = scmp.eq.s32.totalorder %s19, 0
      %p110 = por %p108, %p109
      %p111 = scmp.ne.s32.totalorder %s97, %s98
      %p112 = scmp.eq.s32.totalorder %s20, 1
      %p113 = por %p111, %p112
      %p115 = scmp.ne.s32.totalorder %s98, %s114
      %p116 = scmp.eq.s32.totalorder %s20, 0
      %p117 = por %p115, %p116
      %s119 = sadd.s32 %s118, 1
      %p122 = scmp.eq.s32.totalorder %s14, 1
      %p123 = scmp.ne.s32.totalorder %s118, %s120
      %p124 = scmp.eq.s32.totalorder %s14, 0
      %p125 = por %p123, %p124
      %p126 = scmp.ne.s32.totalorder %s118, %s120
      %p127 = scmp.eq.s32.totalorder %s19, 1
      %p128 = por %p126, %p127
      %p129 = scmp.ne.s32.totalorder %s120, %s121
      %p130 = scmp.eq.s32.totalorder %s19, 0
      %p131 = por %p129, %p130
      %p132 = scmp.ne.s32.totalorder %s120, %s121
      %p133 = scmp.eq.s32.totalorder %s20, 1
      %p134 = por %p132, %p133
      %p136 = scmp.ne.s32.totalorder %s121, %s135
      %p137 = scmp.eq.s32.totalorder %s20, 0
      %p138 = por %p136, %p137
      %s140 = sadd.s32 %s139, 1
      %p143 = scmp.eq.s32.totalorder %s14, 1
      %p144 = scmp.ne.s32.totalorder %s139, %s141
      %p145 = scmp.eq.s32.totalorder %s14, 0
      %p146 = por %p144, %p145
      %p147 = scmp.ne.s32.totalorder %s139, %s141
      %p148 = scmp.eq.s32.totalorder %s19, 1
      %p149 = por %p147, %p148
      %p150 = scmp.ne.s32.totalorder %s141, %s142
      %p151 = scmp.eq.s32.totalorder %s19, 0
      %p152 = por %p150, %p151
      %p153 = scmp.ne.s32.totalorder %s141, %s142
      %p154 = scmp.eq.s32.totalorder %s20, 1
      %p155 = por %p153, %p154
      %p157 = scmp.ne.s32.totalorder %s142, %s156
      %p158 = scmp.eq.s32.totalorder %s20, 0
      %p159 = por %p157, %p158
      %s160 = ssub.s32 %s21, %s33
      %s161 = ssub.s32 %s22, %s29
      %s162 = sor.u32 %s160, %s161
      %p163 = scmp.eq.s32.totalorder %s162, 0
      %s165 = sadd.s32 %s164, 1
      %s166 = scalar_select %p163, %s164, %s165
      %p169 = pneg %p163
      %p170 = scmp.eq.s32.totalorder %s14, 1
      %p171 = por %p169, %p170
      %p172 = scmp.ne.s32.totalorder %s164, %s167
      %p173 = scmp.eq.s32.totalorder %s14, 0
      %p174 = por %p172, %p173
      %p175 = scmp.ne.s32.totalorder %s164, %s167
      %p176 = scmp.eq.s32.totalorder %s19, 1
      %p177 = por %p175, %p176
      %p178 = scmp.ne.s32.totalorder %s167, %s168
      %p179 = scmp.eq.s32.totalorder %s19, 0
      %p180 = por %p178, %p179
      %p181 = scmp.ne.s32.totalorder %s167, %s168
      %p182 = scmp.eq.s32.totalorder %s20, 1
      %p183 = por %p181, %p182
      %p185 = scmp.ne.s32.totalorder %s168, %s184
      %p186 = scmp.eq.s32.totalorder %s20, 0
      %p187 = por %p185, %p186
      %p188 = scmp.le.s32.totalorder 1, %s14
      %p189 = scmp.lt.s32.totalorder %s14, 3
      %p190 = pnand %p188, %p189
      %p191 = pneg %p190
      // Predicated region
      $region9: #{decompress_jpeg.3} parent=5 // pred_check
        _
      $region10: #{decompress_jpeg.3} parent=5 // pred_check_branch
        %193 = sbr.rel (%p190) target = $region12
      $region11: #{decompress_jpeg.3} parent=5 // pred_region
        %s194 = ssub.s32 %s14, 1
        // Predicated region
        $region13: #{decompress_jpeg.3} parent=11 // pred_check
          %p195 = pneg %p131
        $region14: #{decompress_jpeg.3} parent=11 // pred_check_branch
          %197 = sbr.rel (%p195) target = $region16
        $region15: #{decompress_jpeg.3} parent=11 // pred_region
          _
        $region16: #{decompress_jpeg.3} parent=11 // pred_fallthru
          _
        // Predicated region
        $region17: #{decompress_jpeg.3} parent=11 // pred_check
          %p198 = pneg %p152
        $region18: #{decompress_jpeg.3} parent=11 // pred_check_branch
          %200 = sbr.rel (%p198) target = $region20
        $region19: #{decompress_jpeg.3} parent=11 // pred_region
          _
        $region20: #{decompress_jpeg.3} parent=11 // pred_fallthru
          _
      $region12: #{decompress_jpeg.3} parent=5 // pred_fallthru
        _
      %p201 = scmp.lt.s32.totalorder %s14, 2
      // Predicated region
      $region21: #{decompress_jpeg.3} parent=5 // pred_check
        %p202 = pneg %p201
      $region22: #{decompress_jpeg.3} parent=5 // pred_check_branch
        %204 = sbr.rel (%p202) target = $region24
      $region23: #{decompress_jpeg.3} parent=5 // pred_region
        // Predicated region
        $region25: #{decompress_jpeg.3} parent=23 // pred_check
          %p205 = pneg %p48
        $region26: #{decompress_jpeg.3} parent=23 // pred_check_branch
          %207 = sbr.rel (%p205) target = $region28
        $region27: #{decompress_jpeg.3} parent=23 // pred_region
          %s208 = smul.u32 4, %s22
          %p209 = scmp.lt.s32.totalorder %s21, 1
          %s210 = scalar_select %p209, %s21, 1
          %p211 = scmp.lt.s32.totalorder %s208, 3
          %s212 = scalar_select %p211, %s208, 3
          %s213 = smul.addr %s210, 4
          %s214 = sadd.s32 %s212, %s213
          %s215 = smul.addr %s214, 8
          %s216 = scalar_lea.vmem %s0, %s215
          %s217 = smul.u32 4, %s22
        $region28: #{decompress_jpeg.3} parent=23 // pred_fallthru
          _
        // Predicated region
        $region29: #{decompress_jpeg.3} parent=23 // pred_check
          %p218 = pneg %p76
        $region30: #{decompress_jpeg.3} parent=23 // pred_check_branch
          %220 = sbr.rel (%p218) target = $region32
        $region31: #{decompress_jpeg.3} parent=23 // pred_region
          %s221 = smul.u32 2, %s22
          %p222 = scmp.lt.s32.totalorder %s21, 1
          %s223 = scalar_select %p222, %s21, 1
          %p224 = scmp.lt.s32.totalorder %s221, 1
          %s225 = scalar_select %p224, %s221, 1
          %s226 = smul.addr %s223, 2
          %s227 = sadd.s32 %s225, %s226
          %s228 = smul.addr %s227, 8
          %s229 = scalar_lea.vmem %s1, %s228
          %s230 = smul.u32 2, %s22
        $region32: #{decompress_jpeg.3} parent=23 // pred_fallthru
          _
        // Predicated region
        $region33: #{decompress_jpeg.3} parent=23 // pred_check
          %p231 = pneg %p104
        $region34: #{decompress_jpeg.3} parent=23 // pred_check_branch
          %233 = sbr.rel (%p231) target = $region36
        $region35: #{decompress_jpeg.3} parent=23 // pred_region
          %s234 = smul.u32 2, %s22
          %p235 = scmp.lt.s32.totalorder %s21, 1
          %s236 = scalar_select %p235, %s21, 1
          %p237 = scmp.lt.s32.totalorder %s234, 1
          %s238 = scalar_select %p237, %s234, 1
          %s239 = smul.addr %s236, 2
          %s240 = sadd.s32 %s238, %s239
          %s241 = smul.addr %s240, 8
          %s242 = scalar_lea.vmem %s2, %s241
          %s243 = smul.u32 2, %s22
        $region36: #{decompress_jpeg.3} parent=23 // pred_fallthru
          _
      $region24: #{decompress_jpeg.3} parent=5 // pred_fallthru
        _
      %p244 = scmp.le.s32.totalorder 1, %s14
      %p245 = scmp.lt.s32.totalorder %s14, 3
      %p246 = pnand %p244, %p245
      %p247 = pneg %p246
      // Predicated region
      $region37: #{decompress_jpeg.3} parent=5 // pred_check
        _
      $region38: #{decompress_jpeg.3} parent=5 // pred_check_branch
        %249 = sbr.rel (%p246) target = $region40
      $region39: #{decompress_jpeg.3} parent=5 // pred_region
        %s250 = ssub.s32 %s14, 1
        %s251 = smul.u32 4, %s24
        %p252 = scmp.lt.s32.totalorder %s23, 1
        %s253 = scalar_select %p252, %s23, 1
        %p254 = scmp.lt.s32.totalorder %s251, 3
        %s255 = scalar_select %p254, %s251, 3
        %s256 = smul.addr %s253, 4
        %s257 = sadd.s32 %s255, %s256
        %s258 = smul.addr %s257, 8
        %s259 = scalar_lea.vmem %s0, %s258
        %p260 = pneg %p54
        %p261 = pneg %p51
        %s262 = smul.u32 2, %s24
        %p263 = scmp.lt.s32.totalorder %s23, 1
        %s264 = scalar_select %p263, %s23, 1
        %p265 = scmp.lt.s32.totalorder %s262, 1
        %s266 = scalar_select %p265, %s262, 1
        %s267 = smul.addr %s264, 2
        %s268 = sadd.s32 %s266, %s267
        %s269 = smul.addr %s268, 8
        %s270 = scalar_lea.vmem %s1, %s269
        %p271 = pneg %p82
        %p272 = pneg %p79
        %s273 = smul.u32 2, %s24
        %p274 = scmp.lt.s32.totalorder %s23, 1
        %s275 = scalar_select %p274, %s23, 1
        %p276 = scmp.lt.s32.totalorder %s273, 1
        %s277 = scalar_select %p276, %s273, 1
        %s278 = smul.addr %s275, 2
        %s279 = sadd.s32 %s277, %s278
        %s280 = smul.addr %s279, 8
        %s281 = scalar_lea.vmem %s2, %s280
        %p282 = pneg %p110
        %p283 = pneg %p107
        %p284 = pneg %p131
        %p285 = pneg %p128
        %p286 = pneg %p152
        %p287 = pneg %p149
        %p288 = pneg %p180
        %p289 = pneg %p177
        %s290 = sand.u32 %s167, 1
        %s291 = scalar_lea.sflag [#allocation3], %s290
        %s292 = sand.u32 %s167, 1
        %s293 = smul.addr %s292, 96
        %s294 = scalar_lea.vmem [#allocation2], %s293
        %s295 = smul.u32 4, %s24
        %p296 = scmp.lt.s32.totalorder %s23, 1
        %s297 = scalar_select %p296, %s23, 1
        %p298 = scmp.lt.s32.totalorder %s295, 3
        %s299 = scalar_select %p298, %s295, 3
        %s300 = smul.addr %s297, 4
        %s301 = sadd.s32 %s299, %s300
        %s302 = smul.addr %s301, 8
        %s303 = scalar_lea.vmem %s0, %s302
        %s304 = smul.u32 4, %s24
        %s305 = smul.u32 2, %s24
        %p306 = scmp.lt.s32.totalorder %s23, 1
        %s307 = scalar_select %p306, %s23, 1
        %p308 = scmp.lt.s32.totalorder %s305, 1
        %s309 = scalar_select %p308, %s305, 1
        %s310 = smul.addr %s307, 2
        %s311 = sadd.s32 %s309, %s310
        %s312 = smul.addr %s311, 8
        %s313 = scalar_lea.vmem %s1, %s312
        %s314 = smul.u32 2, %s24
        %s315 = smul.u32 2, %s24
        %p316 = scmp.lt.s32.totalorder %s23, 1
        %s317 = scalar_select %p316, %s23, 1
        %p318 = scmp.lt.s32.totalorder %s315, 1
        %s319 = scalar_select %p318, %s315, 1
        %s320 = smul.addr %s317, 2
        %s321 = sadd.s32 %s319, %s320
        %s322 = smul.addr %s321, 8
        %s323 = scalar_lea.vmem %s2, %s322
        %s324 = smul.u32 2, %s24
        %s325 = smul.u32 4, %s24
        %v326 = vld [vmem:[%s303] sm:$0xff]
        %v327 = vld [vmem:[%s303 + $0x8] sm:$0xff]
        %v328 = vld [vmem:[%s303 + $0x10] sm:$0xff]
        %v329 = vld [vmem:[%s303 + $0x18] sm:$0xff]
        %v330 = vld [vmem:[%s3] sm:$0xff]
        %v331 = vld [vmem:[%s3 + $0x8] sm:$0xff]
        %v332 = vld [vmem:[%s3 + $0x10] sm:$0xff]
        %v333 = vld [vmem:[%s3 + $0x18] sm:$0xff]
        %v334 = vld [vmem:[%s4] sm:$0xff]
        %v335 = vld [vmem:[%s4 + $0x8] sm:$0xff]
        %v336 = vld [vmem:[%s313] sm:$0xff]
        %v337 = vld [vmem:[%s313 + $0x8] sm:$0xff]
        %vm338 = vcmask 130048
        %v340 = vsel %vm338, %v330, 0
        %v343 = vsel %vm338, %v331, 0
        %v346 = vsel %vm338, %v332, 0
        %v349 = vsel %vm338, %v333, 0
        %351 = vmatpush.msra.mxu0 0.0
        %352 = vmatpush.msra.mxu0 0.0
        %353 = vmatpush.msra.mxu0 0.0
        %354 = vmatpush.msra.mxu0 0.0
        %355 = vmatpush.msra.mxu0 0.0
        %356 = vmatpush.msra.mxu0 0.0
        %357 = vmatpush.msra.mxu0 0.0
        %358 = vmatpush.msra.mxu0 0.0
        %359 = vmatpush.msra.mxu0 0.0
        %360 = vmatpush.msra.mxu0 0.0
        %361 = vmatpush.msra.mxu0 0.0
        %362 = vmatpush.msra.mxu0 0.0
        %363 = vmatpush.msra.mxu0 0.0
        %364 = vmatpush.msra.mxu0 0.0
        %365 = vmatpush.msra.mxu0 %v337
        %366 = vmatpush.msra.mxu0 %v336
        %367 = vmatmul.f32.gmra.mxu0 %v340
        %v368 = vpop.f32.mrf.mxu0
        %v369 = vadd.f32 0.0, %v368
        %370 = vmatmul.f32.gmra.mxu0 %v343
        %v371 = vpop.f32.mrf.mxu0
        %v372 = vadd.f32 0.0, %v371
        %373 = vmatmul.f32.gmra.mxu0 %v346
        %v374 = vpop.f32.mrf.mxu0
        %v375 = vadd.f32 0.0, %v374
        %376 = vmatmul.f32.gmra.mxu0 %v349
        %v377 = vpop.f32.mrf.mxu0
        %v378 = vadd.f32 0.0, %v377
        %379 = vdwg.mxu0
        %v381 = vsel %vm338, %v369, 0
        %v384 = vsel %vm338, %v372, 0
        %v387 = vsel %vm338, %v375, 0
        %v390 = vsel %vm338, %v378, 0
        %392 = vmatpush.msra.mxu0 0.0
        %393 = vmatpush.msra.mxu0 0.0
        %394 = vmatpush.msra.mxu0 0.0
        %395 = vmatpush.msra.mxu0 0.0
        %396 = vmatpush.msra.mxu0 0.0
        %397 = vmatpush.msra.mxu0 0.0
        %398 = vmatpush.msra.mxu0 0.0
        %399 = vmatpush.msra.mxu0 0.0
        %400 = vmatpush.msra.mxu0 0.0
        %401 = vmatpush.msra.mxu0 0.0
        %402 = vmatpush.msra.mxu0 0.0
        %403 = vmatpush.msra.mxu0 0.0
        %404 = vmatpush.msra.mxu0 0.0
        %405 = vmatpush.msra.mxu0 0.0
        %406 = vmatpush.msra.mxu0 %v335
        %407 = vmatpush.msra.mxu0 %v334
        %408 = vmatmul.f32.gmra.mxu0 %v381
        %v409 = vpop.f32.mrf.mxu0
        %v410 = vadd.f32 0.0, %v409
        %411 = vmatmul.f32.gmra.mxu0 %v384
        %v412 = vpop.f32.mrf.mxu0
        %v413 = vadd.f32 0.0, %v412
        %414 = vmatmul.f32.gmra.mxu0 %v387
        %v415 = vpop.f32.mrf.mxu0
        %v416 = vadd.f32 0.0, %v415
        %417 = vmatmul.f32.gmra.mxu0 %v390
        %v418 = vpop.f32.mrf.mxu0
        %v419 = vadd.f32 0.0, %v418
        %420 = vdwg.mxu0
        %v421 = vsub.f32 %v410, 128.0
        %v422 = vsub.f32 %v413, 128.0
        %v423 = vsub.f32 %v416, 128.0
        %v424 = vsub.f32 %v419, 128.0
        %v425 = vld [vmem:[%s323] sm:$0xff]
        %v426 = vld [vmem:[%s323 + $0x8] sm:$0xff]
        %427 = vmatpush.msra.mxu0 0.0
        %428 = vmatpush.msra.mxu0 0.0
        %429 = vmatpush.msra.mxu0 0.0
        %430 = vmatpush.msra.mxu0 0.0
        %431 = vmatpush.msra.mxu0 0.0
        %432 = vmatpush.msra.mxu0 0.0
        %433 = vmatpush.msra.mxu0 0.0
        %434 = vmatpush.msra.mxu0 0.0
        %435 = vmatpush.msra.mxu0 0.0
        %436 = vmatpush.msra.mxu0 0.0
        %437 = vmatpush.msra.mxu0 0.0
        %438 = vmatpush.msra.mxu0 0.0
        %439 = vmatpush.msra.mxu0 0.0
        %440 = vmatpush.msra.mxu0 0.0
        %441 = vmatpush.msra.mxu0 %v426
        %442 = vmatpush.msra.mxu0 %v425
        %443 = vmatmul.f32.gmra.mxu0 %v340
        %v444 = vpop.f32.mrf.mxu0
        %v445 = vadd.f32 0.0, %v444
        %446 = vmatmul.f32.gmra.mxu0 %v343
        %v447 = vpop.f32.mrf.mxu0
        %v448 = vadd.f32 0.0, %v447
        %449 = vmatmul.f32.gmra.mxu0 %v346
        %v450 = vpop.f32.mrf.mxu0
        %v451 = vadd.f32 0.0, %v450
        %452 = vmatmul.f32.gmra.mxu0 %v349
        %v453 = vpop.f32.mrf.mxu0
        %v454 = vadd.f32 0.0, %v453
        %455 = vdwg.mxu0
        %v457 = vsel %vm338, %v445, 0
        %v460 = vsel %vm338, %v448, 0
        %v463 = vsel %vm338, %v451, 0
        %v466 = vsel %vm338, %v454, 0
        %468 = vmatpush.msra.mxu0 0.0
        %469 = vmatpush.msra.mxu0 0.0
        %470 = vmatpush.msra.mxu0 0.0
        %471 = vmatpush.msra.mxu0 0.0
        %472 = vmatpush.msra.mxu0 0.0
        %473 = vmatpush.msra.mxu0 0.0
        %474 = vmatpush.msra.mxu0 0.0
        %475 = vmatpush.msra.mxu0 0.0
        %476 = vmatpush.msra.mxu0 0.0
        %477 = vmatpush.msra.mxu0 0.0
        %478 = vmatpush.msra.mxu0 0.0
        %479 = vmatpush.msra.mxu0 0.0
        %480 = vmatpush.msra.mxu0 0.0
        %481 = vmatpush.msra.mxu0 0.0
        %482 = vmatpush.msra.mxu0 %v335
        %483 = vmatpush.msra.mxu0 %v334
        %484 = vmatmul.f32.gmra.mxu0 %v457
        %v485 = vpop.f32.mrf.mxu0
        %v486 = vadd.f32 0.0, %v485
        %487 = vmatmul.f32.gmra.mxu0 %v460
        %v488 = vpop.f32.mrf.mxu0
        %v489 = vadd.f32 0.0, %v488
        %490 = vmatmul.f32.gmra.mxu0 %v463
        %v491 = vpop.f32.mrf.mxu0
        %v492 = vadd.f32 0.0, %v491
        %493 = vmatmul.f32.gmra.mxu0 %v466
        %v494 = vpop.f32.mrf.mxu0
        %v495 = vadd.f32 0.0, %v494
        %496 = vdwg.mxu0
        %v497 = vsub.f32 %v486, 128.0
        %v498 = vsub.f32 %v489, 128.0
        %v499 = vsub.f32 %v492, 128.0
        %v500 = vsub.f32 %v495, 128.0
        %v501 = vmul.f32 %v497, 1.402
        %v502 = vmul.f32 %v498, 1.402
        %v503 = vmul.f32 %v499, 1.402
        %v504 = vmul.f32 %v500, 1.402
        %v505 = vadd.f32 %v326, %v501
        %v506 = vadd.f32 %v327, %v502
        %v507 = vadd.f32 %v328, %v503
        %v508 = vadd.f32 %v329, %v504
        %v509 = vmul.f32 %v421, 0.344136
        %v510 = vmul.f32 %v422, 0.344136
        %v511 = vmul.f32 %v423, 0.344136
        %v512 = vmul.f32 %v424, 0.344136
        %v513 = vsub.f32 %v326, %v509
        %v514 = vsub.f32 %v327, %v510
        %v515 = vsub.f32 %v328, %v511
        %v516 = vsub.f32 %v329, %v512
        %v517 = vmul.f32 %v497, 0.714136
        %v518 = vmul.f32 %v498, 0.714136
        %v519 = vmul.f32 %v499, 0.714136
        %v520 = vmul.f32 %v500, 0.714136
        %v521 = vsub.f32 %v513, %v517
        %v522 = vsub.f32 %v514, %v518
        %v523 = vsub.f32 %v515, %v519
        %v524 = vsub.f32 %v516, %v520
        %v525 = vmul.f32 %v421, 1.772
        %v526 = vmul.f32 %v422, 1.772
        %v527 = vmul.f32 %v423, 1.772
        %v528 = vmul.f32 %v424, 1.772
        %v529 = vadd.f32 %v326, %v525
        %v530 = vadd.f32 %v327, %v526
        %v531 = vadd.f32 %v328, %v527
        %v532 = vadd.f32 %v329, %v528
        %v533 = vmax.f32 %v505, 0.0
        %v534 = vmax.f32 %v506, 0.0
        %v535 = vmax.f32 %v507, 0.0
        %v536 = vmax.f32 %v508, 0.0
        %v537 = vmin.f32 %v533, 255.0
        %v538 = vmin.f32 %v534, 255.0
        %v539 = vmin.f32 %v535, 255.0
        %v540 = vmin.f32 %v536, 255.0
        %v541 = vmul.f32 %v537, 0.003921569
        %v542 = vmul.f32 %v538, 0.003921569
        %v543 = vmul.f32 %v539, 0.003921569
        %v544 = vmul.f32 %v540, 0.003921569
        %vm545 = vcmask 261120
        %546 = vst.msk [vmem:[%s294] sm:$0xff] %vm545, %v541
        %547 = vst.msk [vmem:[%s294 + $0x8] sm:$0xff] %vm545, %v542
        %548 = vst.msk [vmem:[%s294 + $0x10] sm:$0xff] %vm545, %v543
        %549 = vst.msk [vmem:[%s294 + $0x18] sm:$0xff] %vm545, %v544
        %v550 = vmax.f32 %v521, 0.0
        %v551 = vmax.f32 %v522, 0.0
        %v552 = vmax.f32 %v523, 0.0
        %v553 = vmax.f32 %v524, 0.0
        %v554 = vmin.f32 %v550, 255.0
        %v555 = vmin.f32 %v551, 255.0
        %v556 = vmin.f32 %v552, 255.0
        %v557 = vmin.f32 %v553, 255.0
        %v558 = vmul.f32 %v554, 0.003921569
        %v559 = vmul.f32 %v555, 0.003921569
        %v560 = vmul.f32 %v556, 0.003921569
        %v561 = vmul.f32 %v557, 0.003921569
        %s562 = scalar_lea.vmem %s294, 32 [#allocation2]
        %563 = vst.msk [vmem:[%s562] sm:$0xff] %vm545, %v558
        %564 = vst.msk [vmem:[%s562 + $0x8] sm:$0xff] %vm545, %v559
        %565 = vst.msk [vmem:[%s562 + $0x10] sm:$0xff] %vm545, %v560
        %566 = vst.msk [vmem:[%s562 + $0x18] sm:$0xff] %vm545, %v561
        %v567 = vmax.f32 %v529, 0.0
        %v568 = vmax.f32 %v530, 0.0
        %v569 = vmax.f32 %v531, 0.0
        %v570 = vmax.f32 %v532, 0.0
        %v571 = vmin.f32 %v567, 255.0
        %v572 = vmin.f32 %v568, 255.0
        %v573 = vmin.f32 %v569, 255.0
        %v574 = vmin.f32 %v570, 255.0
        %v575 = vmul.f32 %v571, 0.003921569
        %v576 = vmul.f32 %v572, 0.003921569
        %v577 = vmul.f32 %v573, 0.003921569
        %v578 = vmul.f32 %v574, 0.003921569
        %s579 = scalar_lea.vmem %s294, 64 [#allocation2]
        %580 = vst.msk [vmem:[%s579] sm:$0xff] %vm545, %v575
        %581 = vst.msk [vmem:[%s579 + $0x8] sm:$0xff] %vm545, %v576
        %582 = vst.msk [vmem:[%s579 + $0x10] sm:$0xff] %vm545, %v577
        %583 = vst.msk [vmem:[%s579 + $0x18] sm:$0xff] %vm545, %v578
        %s584 = sand.u32 %s167, 1
        %s585 = scalar_lea.sflag [#allocation3], %s584
        %s586 = sand.u32 %s167, 1
        %s587 = smul.addr %s586, 96
        %s588 = scalar_lea.vmem [#allocation2], %s587
        // Predicated region
        $region41: #{decompress_jpeg.3} parent=39 // pred_check
          %p589 = pneg %p177
        $region42: #{decompress_jpeg.3} parent=39 // pred_check_branch
          %591 = sbr.rel (%p589) target = $region44
        $region43: #{decompress_jpeg.3} parent=39 // pred_region
          %s592 = smul.u32 4, %s24
          %594 = vsyncadd %s585, 0
          %s595 = smul.addr %s23, 12
          %s596 = sadd.s32 %s592, %s595
          %s597 = smul.addr %s596, 8
          %s598 = scalar_lea.hbm %s5, %s597
          %s599 = sshll.u32 %s588, 4
          %s600 = int_to_ptr.vmem [resolvable:$true] %s599
          %s601 = sshll.u32 %s598, 4
          %s602 = int_to_ptr.hbm [resolvable:$true] %s601
          %607 = dma.vmem_to_hbm [thread:$0]  %s600, 1536, %s602, %s585, 128, 128, 8
        $region44: #{decompress_jpeg.3} parent=39 // pred_fallthru
          _
      $region40: #{decompress_jpeg.3} parent=5 // pred_fallthru
        _
      %p608 = scmp.le.s32.totalorder 2, %s14
      // Predicated region
      $region45: #{decompress_jpeg.3} parent=5 // pred_check
        %p609 = pneg %p608
      $region46: #{decompress_jpeg.3} parent=5 // pred_check_branch
        %611 = sbr.rel (%p609) target = $region48
      $region47: #{decompress_jpeg.3} parent=5 // pred_region
        %s612 = ssub.s32 %s14, 2
        // Predicated region
        $region49: #{decompress_jpeg.3} parent=47 // pred_check
          %p613 = pneg %p183
        $region50: #{decompress_jpeg.3} parent=47 // pred_check_branch
          %615 = sbr.rel (%p613) target = $region52
        $region51: #{decompress_jpeg.3} parent=47 // pred_region
          %s616 = sand.u32 %s168, 1
          %s617 = scalar_lea.sflag [#allocation3], %s616
          %s618 = sand.u32 %s168, 1
          %s619 = smul.addr %s618, 96
          %s620 = scalar_lea.vmem [#allocation2], %s619
          %622 = dma.done %s617, 1536
        $region52: #{decompress_jpeg.3} parent=47 // pred_fallthru
          _
      $region48: #{decompress_jpeg.3} parent=5 // pred_fallthru
        _
    $region6: #{decompress_jpeg.3} parent=1 // loop_footer
      %s18 = sadd.s32 1, %s14
    $region7: #{decompress_jpeg.3} parent=1 // loop_footer_branch
      %13 = sbr.rel target = $region3
    $region8: #{decompress_jpeg.3} parent=1 // loop_exit
      _
    %623 = vsyncpa [#allocation3], 1
    %s624 = scalar_lea.sflag [#allocation3], 1
    %625 = vsyncpa %s624, 1

// kernel: decompress_jpeg.2
$region0: #{decompress_jpeg.2}
  #allocation0 [shape = 'u32[]', space=smem, size = 0x4, offset = 0x4, fixed_abs, tag = 'smem constant byte address 0x4 - core index']
  #allocation1 [shape = 'u32[72,128]{1,0:T(1,128)}', space=vmem, size = 0x9000, scoped, tag = 'internal scratch']
  %s0 = inlined_call_operand.vmem [shape: f32[2,8,128], index: 0, kind: input, shape index: {}]
  %s1 = inlined_call_operand.vmem [shape: f32[2,2,128], index: 1, kind: input, shape index: {}]
  %s2 = inlined_call_operand.vmem [shape: f32[2,2,128], index: 2, kind: input, shape index: {}]
  %s3 = inlined_call_operand.vmem [shape: f32[128,128], index: 3, kind: input, shape index: {}]
  %s4 = inlined_call_operand.vmem [shape: f32[128,128], index: 4, kind: input, shape index: {}]
  %s5 = inlined_call_operand.vmem [shape: f32[2,8,128], index: 5, kind: output, shape index: {0}]
  %s6 = inlined_call_operand.vmem [shape: f32[2,2,128], index: 6, kind: output, shape index: {1}]
  %s7 = inlined_call_operand.vmem [shape: f32[2,2,128], index: 7, kind: output, shape index: {2}]
  %8 = xla_tuple %s5, %s6, %s7
  %s9 = sld [smem:[#allocation0]]
  $region69: #{decompress_jpeg.2} parent=0
    _
  %s11 = ssub.s32 1, %s9
  %s12 = scalar_select 0, %s11, %s9
  loop: start=0, step=1, limit=4
  $region2: #{decompress_jpeg.2} parent=0 // loop_pre_header
    _
  $region3: #{decompress_jpeg.2} parent=0 // loop_header
    %s14 = sphi 0, %s18
    %p15 = scmp.ge.s32.totalorder %s14, 4
    %s21 = sphi 0, %s33
    %s22 = sphi 0, %s29
    %s23 = sphi 0, %s21
    %s24 = sphi 0, %s22
    %s25 = sphi 0, %s23
    %s26 = sphi 0, %s24
    %s38 = sphi 0, %s40
    %s41 = sphi 0, %s38
    %s42 = sphi 0, %s41
    %s58 = sphi 0, %s42
    %s66 = sphi 0, %s68
    %s69 = sphi 0, %s66
    %s70 = sphi 0, %s69
    %s86 = sphi 0, %s70
    %s94 = sphi 0, %s96
    %s97 = sphi 0, %s94
    %s98 = sphi 0, %s97
    %s114 = sphi 0, %s98
    %s118 = sphi 0, %s118
    %s120 = sphi 0, %s118
    %s121 = sphi 0, %s120
    %s135 = sphi 0, %s121
    %s139 = sphi 0, %s139
    %s141 = sphi 0, %s139
    %s142 = sphi 0, %s141
    %s156 = sphi 0, %s142
    %s164 = sphi 0, %s166
    %s167 = sphi 0, %s164
    %s168 = sphi 0, %s167
    %s184 = sphi 0, %s168
    %s192 = sphi 0, %s194
    %s195 = sphi 0, %s192
    %s196 = sphi 0, %s195
    %s212 = sphi 0, %s196
    %s220 = sphi 0, %s222
    %s223 = sphi 0, %s220
    %s224 = sphi 0, %s223
    %s240 = sphi 0, %s224
  $region4: #{decompress_jpeg.2} parent=0 // loop_header_branch
    %17 = sbr.rel (%p15) target = $region8
  $region5: #{decompress_jpeg.2} parent=0 // loop_body
    %s19 = ssub.s32 %s14, 1
    %s20 = ssub.s32 %s14, 2
    %s27 = sadd.s32 1, %s22
    %p28 = scmp.ge.s32.totalorder %s27, 1
    %s29 = scalar_select %p28, 0, %s27
    %s30 = sadd.s32 1, %s21
    %s31 = scalar_select %p28, %s30, %s21
    %p32 = scmp.ge.s32.totalorder %s31, 2
    %s33 = scalar_select %p32, 0, %s31
    %s34 = ssub.s32 %s21, %s33
    %s35 = ssub.s32 %s22, %s29
    %s36 = sor.u32 %s34, %s35
    %p37 = scmp.eq.s32.totalorder %s36, 0
    %s39 = sadd.s32 %s38, 1
    %s40 = scalar_select %p37, %s38, %s39
    %p43 = pneg %p37
    %p44 = scmp.eq.s32.totalorder %s14, 1
    %p45 = por %p43, %p44
    %p46 = scmp.ne.s32.totalorder %s38, %s41
    %p47 = scmp.eq.s32.totalorder %s14, 0
    %p48 = por %p46, %p47
    %p49 = scmp.ne.s32.totalorder %s38, %s41
    %p50 = scmp.eq.s32.totalorder %s19, 1
    %p51 = por %p49, %p50
    %p52 = scmp.ne.s32.totalorder %s41, %s42
    %p53 = scmp.eq.s32.totalorder %s19, 0
    %p54 = por %p52, %p53
    %p55 = scmp.ne.s32.totalorder %s41, %s42
    %p56 = scmp.eq.s32.totalorder %s20, 1
    %p57 = por %p55, %p56
    %p59 = scmp.ne.s32.totalorder %s42, %s58
    %p60 = scmp.eq.s32.totalorder %s20, 0
    %p61 = por %p59, %p60
    %s62 = ssub.s32 %s21, %s33
    %s63 = ssub.s32 %s22, %s29
    %s64 = sor.u32 %s62, %s63
    %p65 = scmp.eq.s32.totalorder %s64, 0
    %s67 = sadd.s32 %s66, 1
    %s68 = scalar_select %p65, %s66, %s67
    %p71 = pneg %p65
    %p72 = scmp.eq.s32.totalorder %s14, 1
    %p73 = por %p71, %p72
    %p74 = scmp.ne.s32.totalorder %s66, %s69
    %p75 = scmp.eq.s32.totalorder %s14, 0
    %p76 = por %p74, %p75
    %p77 = scmp.ne.s32.totalorder %s66, %s69
    %p78 = scmp.eq.s32.totalorder %s19, 1
    %p79 = por %p77, %p78
    %p80 = scmp.ne.s32.totalorder %s69, %s70
    %p81 = scmp.eq.s32.totalorder %s19, 0
    %p82 = por %p80, %p81
    %p83 = scmp.ne.s32.totalorder %s69, %s70
    %p84 = scmp.eq.s32.totalorder %s20, 1
    %p85 = por %p83, %p84
    %p87 = scmp.ne.s32.totalorder %s70, %s86
    %p88 = scmp.eq.s32.totalorder %s20, 0
    %p89 = por %p87, %p88
    %s90 = ssub.s32 %s21, %s33
    %s91 = ssub.s32 %s22, %s29
    %s92 = sor.u32 %s90, %s91
    %p93 = scmp.eq.s32.totalorder %s92, 0
    %s95 = sadd.s32 %s94, 1
    %s96 = scalar_select %p93, %s94, %s95
    %p99 = pneg %p93
    %p100 = scmp.eq.s32.totalorder %s14, 1
    %p101 = por %p99, %p100
    %p102 = scmp.ne.s32.totalorder %s94, %s97
    %p103 = scmp.eq.s32.totalorder %s14, 0
    %p104 = por %p102, %p103
    %p105 = scmp.ne.s32.totalorder %s94, %s97
    %p106 = scmp.eq.s32.totalorder %s19, 1
    %p107 = por %p105, %p106
    %p108 = scmp.ne.s32.totalorder %s97, %s98
    %p109 = scmp.eq.s32.totalorder %s19, 0
    %p110 = por %p108, %p109
    %p111 = scmp.ne.s32.totalorder %s97, %s98
    %p112 = scmp.eq.s32.totalorder %s20, 1
    %p113 = por %p111, %p112
    %p115 = scmp.ne.s32.totalorder %s98, %s114
    %p116 = scmp.eq.s32.totalorder %s20, 0
    %p117 = por %p115, %p116
    %s119 = sadd.s32 %s118, 1
    %p122 = scmp.eq.s32.totalorder %s14, 1
    %p123 = scmp.ne.s32.totalorder %s118, %s120
    %p124 = scmp.eq.s32.totalorder %s14, 0
    %p125 = por %p123, %p124
    %p126 = scmp.ne.s32.totalorder %s118, %s120
    %p127 = scmp.eq.s32.totalorder %s19, 1
    %p128 = por %p126, %p127
    %p129 = scmp.ne.s32.totalorder %s120, %s121
    %p130 = scmp.eq.s32.totalorder %s19, 0
    %p131 = por %p129, %p130
    %p132 = scmp.ne.s32.totalorder %s120, %s121
    %p133 = scmp.eq.s32.totalorder %s20, 1
    %p134 = por %p132, %p133
    %p136 = scmp.ne.s32.totalorder %s121, %s135
    %p137 = scmp.eq.s32.totalorder %s20, 0
    %p138 = por %p136, %p137
    %s140 = sadd.s32 %s139, 1
    %p143 = scmp.eq.s32.totalorder %s14, 1
    %p144 = scmp.ne.s32.totalorder %s139, %s141
    %p145 = scmp.eq.s32.totalorder %s14, 0
    %p146 = por %p144, %p145
    %p147 = scmp.ne.s32.totalorder %s139, %s141
    %p148 = scmp.eq.s32.totalorder %s19, 1
    %p149 = por %p147, %p148
    %p150 = scmp.ne.s32.totalorder %s141, %s142
    %p151 = scmp.eq.s32.totalorder %s19, 0
    %p152 = por %p150, %p151
    %p153 = scmp.ne.s32.totalorder %s141, %s142
    %p154 = scmp.eq.s32.totalorder %s20, 1
    %p155 = por %p153, %p154
    %p157 = scmp.ne.s32.totalorder %s142, %s156
    %p158 = scmp.eq.s32.totalorder %s20, 0
    %p159 = por %p157, %p158
    %s160 = ssub.s32 %s21, %s33
    %s161 = ssub.s32 %s22, %s29
    %s162 = sor.u32 %s160, %s161
    %p163 = scmp.eq.s32.totalorder %s162, 0
    %s165 = sadd.s32 %s164, 1
    %s166 = scalar_select %p163, %s164, %s165
    %p169 = pneg %p163
    %p170 = scmp.eq.s32.totalorder %s14, 1
    %p171 = por %p169, %p170
    %p172 = scmp.ne.s32.totalorder %s164, %s167
    %p173 = scmp.eq.s32.totalorder %s14, 0
    %p174 = por %p172, %p173
    %p175 = scmp.ne.s32.totalorder %s164, %s167
    %p176 = scmp.eq.s32.totalorder %s19, 1
    %p177 = por %p175, %p176
    %p178 = scmp.ne.s32.totalorder %s167, %s168
    %p179 = scmp.eq.s32.totalorder %s19, 0
    %p180 = por %p178, %p179
    %p181 = scmp.ne.s32.totalorder %s167, %s168
    %p182 = scmp.eq.s32.totalorder %s20, 1
    %p183 = por %p181, %p182
    %p185 = scmp.ne.s32.totalorder %s168, %s184
    %p186 = scmp.eq.s32.totalorder %s20, 0
    %p187 = por %p185, %p186
    %s188 = ssub.s32 %s21, %s33
    %s189 = ssub.s32 %s22, %s29
    %s190 = sor.u32 %s188, %s189
    %p191 = scmp.eq.s32.totalorder %s190, 0
    %s193 = sadd.s32 %s192, 1
    %s194 = scalar_select %p191, %s192, %s193
    %p197 = pneg %p191
    %p198 = scmp.eq.s32.totalorder %s14, 1
    %p199 = por %p197, %p198
    %p200 = scmp.ne.s32.totalorder %s192, %s195
    %p201 = scmp.eq.s32.totalorder %s14, 0
    %p202 = por %p200, %p201
    %p203 = scmp.ne.s32.totalorder %s192, %s195
    %p204 = scmp.eq.s32.totalorder %s19, 1
    %p205 = por %p203, %p204
    %p206 = scmp.ne.s32.totalorder %s195, %s196
    %p207 = scmp.eq.s32.totalorder %s19, 0
    %p208 = por %p206, %p207
    %p209 = scmp.ne.s32.totalorder %s195, %s196
    %p210 = scmp.eq.s32.totalorder %s20, 1
    %p211 = por %p209, %p210
    %p213 = scmp.ne.s32.totalorder %s196, %s212
    %p214 = scmp.eq.s32.totalorder %s20, 0
    %p215 = por %p213, %p214
    %s216 = ssub.s32 %s21, %s33
    %s217 = ssub.s32 %s22, %s29
    %s218 = sor.u32 %s216, %s217
    %p219 = scmp.eq.s32.totalorder %s218, 0
    %s221 = sadd.s32 %s220, 1
    %s222 = scalar_select %p219, %s220, %s221
    %p225 = pneg %p219
    %p226 = scmp.eq.s32.totalorder %s14, 1
    %p227 = por %p225, %p226
    %p228 = scmp.ne.s32.totalorder %s220, %s223
    %p229 = scmp.eq.s32.totalorder %s14, 0
    %p230 = por %p228, %p229
    %p231 = scmp.ne.s32.totalorder %s220, %s223
    %p232 = scmp.eq.s32.totalorder %s19, 1
    %p233 = por %p231, %p232
    %p234 = scmp.ne.s32.totalorder %s223, %s224
    %p235 = scmp.eq.s32.totalorder %s19, 0
    %p236 = por %p234, %p235
    %p237 = scmp.ne.s32.totalorder %s223, %s224
    %p238 = scmp.eq.s32.totalorder %s20, 1
    %p239 = por %p237, %p238
    %p241 = scmp.ne.s32.totalorder %s224, %s240
    %p242 = scmp.eq.s32.totalorder %s20, 0
    %p243 = por %p241, %p242
    %p244 = scmp.le.s32.totalorder 1, %s14
    %p245 = scmp.lt.s32.totalorder %s14, 3
    %p246 = pnand %p244, %p245
    %p247 = pneg %p246
    // Predicated region
    $region9: #{decompress_jpeg.2} parent=5 // pred_check
      _
    $region10: #{decompress_jpeg.2} parent=5 // pred_check_branch
      %249 = sbr.rel (%p246) target = $region12
    $region11: #{decompress_jpeg.2} parent=5 // pred_region
      %s250 = ssub.s32 %s14, 1
      // Predicated region
      $region13: #{decompress_jpeg.2} parent=11 // pred_check
        %p251 = pneg %p131
      $region14: #{decompress_jpeg.2} parent=11 // pred_check_branch
        %253 = sbr.rel (%p251) target = $region16
      $region15: #{decompress_jpeg.2} parent=11 // pred_region
        _
      $region16: #{decompress_jpeg.2} parent=11 // pred_fallthru
        _
      // Predicated region
      $region17: #{decompress_jpeg.2} parent=11 // pred_check
        %p254 = pneg %p152
      $region18: #{decompress_jpeg.2} parent=11 // pred_check_branch
        %256 = sbr.rel (%p254) target = $region20
      $region19: #{decompress_jpeg.2} parent=11 // pred_region
        _
      $region20: #{decompress_jpeg.2} parent=11 // pred_fallthru
        _
    $region12: #{decompress_jpeg.2} parent=5 // pred_fallthru
      _
    %p257 = scmp.lt.s32.totalorder %s14, 2
    // Predicated region
    $region21: #{decompress_jpeg.2} parent=5 // pred_check
      %p258 = pneg %p257
    $region22: #{decompress_jpeg.2} parent=5 // pred_check_branch
      %260 = sbr.rel (%p258) target = $region24
    $region23: #{decompress_jpeg.2} parent=5 // pred_region
      // Predicated region
      $region25: #{decompress_jpeg.2} parent=23 // pred_check
        %p261 = pneg %p48
      $region26: #{decompress_jpeg.2} parent=23 // pred_check_branch
        %263 = sbr.rel (%p261) target = $region28
      $region27: #{decompress_jpeg.2} parent=23 // pred_region
        %p264 = scmp.lt.s32.totalorder %s21, 1
        %s265 = scalar_select %p264, %s21, 1
        %p266 = scmp.lt.s32.totalorder %s22, 0
        %s267 = scalar_select %p266, %s22, 0
        %s268 = sadd.s32 %s267, %s265
        %s269 = smul.addr %s268, 8
        %s270 = scalar_lea.vmem %s0, %s269
      $region28: #{decompress_jpeg.2} parent=23 // pred_fallthru
        _
      // Predicated region
      $region29: #{decompress_jpeg.2} parent=23 // pred_check
        %p271 = pneg %p76
      $region30: #{decompress_jpeg.2} parent=23 // pred_check_branch
        %273 = sbr.rel (%p271) target = $region32
      $region31: #{decompress_jpeg.2} parent=23 // pred_region
        %p274 = scmp.lt.s32.totalorder %s21, 1
        %s275 = scalar_select %p274, %s21, 1
        %p276 = scmp.lt.s32.totalorder %s22, 0
        %s277 = scalar_select %p276, %s22, 0
        %s278 = sadd.s32 %s277, %s275
        %s279 = smul.addr %s278, 2
        %s280 = scalar_lea.vmem %s1, %s279
      $region32: #{decompress_jpeg.2} parent=23 // pred_fallthru
        _
      // Predicated region
      $region33: #{decompress_jpeg.2} parent=23 // pred_check
        %p281 = pneg %p104
      $region34: #{decompress_jpeg.2} parent=23 // pred_check_branch
        %283 = sbr.rel (%p281) target = $region36
      $region35: #{decompress_jpeg.2} parent=23 // pred_region
        %p284 = scmp.lt.s32.totalorder %s21, 1
        %s285 = scalar_select %p284, %s21, 1
        %p286 = scmp.lt.s32.totalorder %s22, 0
        %s287 = scalar_select %p286, %s22, 0
        %s288 = sadd.s32 %s287, %s285
        %s289 = smul.addr %s288, 2
        %s290 = scalar_lea.vmem %s2, %s289
      $region36: #{decompress_jpeg.2} parent=23 // pred_fallthru
        _
    $region24: #{decompress_jpeg.2} parent=5 // pred_fallthru
      _
    %p291 = scmp.le.s32.totalorder 1, %s14
    %p292 = scmp.lt.s32.totalorder %s14, 3
    %p293 = pnand %p291, %p292
    %p294 = pneg %p293
    // Predicated region
    $region37: #{decompress_jpeg.2} parent=5 // pred_check
      _
    $region38: #{decompress_jpeg.2} parent=5 // pred_check_branch
      %296 = sbr.rel (%p293) target = $region40
    $region39: #{decompress_jpeg.2} parent=5 // pred_region
      %s297 = ssub.s32 %s14, 1
      %p298 = scmp.lt.s32.totalorder %s23, 1
      %s299 = scalar_select %p298, %s23, 1
      %p300 = scmp.lt.s32.totalorder %s24, 0
      %s301 = scalar_select %p300, %s24, 0
      %s302 = sadd.s32 %s301, %s299
      %s303 = smul.addr %s302, 8
      %s304 = scalar_lea.vmem %s0, %s303
      %p305 = pneg %p54
      %p306 = pneg %p51
      %p307 = scmp.lt.s32.totalorder %s23, 1
      %s308 = scalar_select %p307, %s23, 1
      %p309 = scmp.lt.s32.totalorder %s24, 0
      %s310 = scalar_select %p309, %s24, 0
      %s311 = sadd.s32 %s310, %s308
      %s312 = smul.addr %s311, 2
      %s313 = scalar_lea.vmem %s1, %s312
      %p314 = pneg %p82
      %p315 = pneg %p79
      %p316 = scmp.lt.s32.totalorder %s23, 1
      %s317 = scalar_select %p316, %s23, 1
      %p318 = scmp.lt.s32.totalorder %s24, 0
      %s319 = scalar_select %p318, %s24, 0
      %s320 = sadd.s32 %s319, %s317
      %s321 = smul.addr %s320, 2
      %s322 = scalar_lea.vmem %s2, %s321
      %p323 = pneg %p110
      %p324 = pneg %p107
      %p325 = pneg %p131
      %p326 = pneg %p128
      %p327 = pneg %p152
      %p328 = pneg %p149
      %p329 = pneg %p180
      %p330 = pneg %p177
      %p331 = scmp.lt.s32.totalorder %s23, 1
      %s332 = scalar_select %p331, %s23, 1
      %p333 = scmp.lt.s32.totalorder %s24, 0
      %s334 = scalar_select %p333, %s24, 0
      %s335 = sadd.s32 %s334, %s332
      %s336 = smul.addr %s335, 8
      %s337 = scalar_lea.vmem %s5, %s336
      %p338 = pneg %p208
      %p339 = pneg %p205
      %p340 = scmp.lt.s32.totalorder %s23, 1
      %s341 = scalar_select %p340, %s23, 1
      %p342 = scmp.lt.s32.totalorder %s24, 0
      %s343 = scalar_select %p342, %s24, 0
      %s344 = sadd.s32 %s343, %s341
      %s345 = smul.addr %s344, 2
      %s346 = scalar_lea.vmem %s6, %s345
      %p347 = pneg %p236
      %p348 = pneg %p233
      %p349 = scmp.lt.s32.totalorder %s23, 1
      %s350 = scalar_select %p349, %s23, 1
      %p351 = scmp.lt.s32.totalorder %s24, 0
      %s352 = scalar_select %p351, %s24, 0
      %s353 = sadd.s32 %s352, %s350
      %s354 = smul.addr %s353, 2
      %s355 = scalar_lea.vmem %s7, %s354
      %p356 = scmp.lt.s32.totalorder %s23, 1
      %s357 = scalar_select %p356, %s23, 1
      %p358 = scmp.lt.s32.totalorder %s24, 0
      %s359 = scalar_select %p358, %s24, 0
      %s360 = sadd.s32 %s359, %s357
      %s361 = smul.addr %s360, 8
      %s362 = scalar_lea.vmem %s0, %s361
      %p363 = scmp.lt.s32.totalorder %s23, 1
      %s364 = scalar_select %p363, %s23, 1
      %p365 = scmp.lt.s32.totalorder %s24, 0
      %s366 = scalar_select %p365, %s24, 0
      %s367 = sadd.s32 %s366, %s364
      %s368 = smul.addr %s367, 2
      %s369 = scalar_lea.vmem %s1, %s368
      %p370 = scmp.lt.s32.totalorder %s23, 1
      %s371 = scalar_select %p370, %s23, 1
      %p372 = scmp.lt.s32.totalorder %s24, 0
      %s373 = scalar_select %p372, %s24, 0
      %s374 = sadd.s32 %s373, %s371
      %s375 = smul.addr %s374, 2
      %s376 = scalar_lea.vmem %s2, %s375
      %p377 = scmp.lt.s32.totalorder %s23, 1
      %s378 = scalar_select %p377, %s23, 1
      %p379 = scmp.lt.s32.totalorder %s24, 0
      %s380 = scalar_select %p379, %s24, 0
      %s381 = sadd.s32 %s380, %s378
      %s382 = smul.addr %s381, 8
      %s383 = scalar_lea.vmem %s5, %s382
      %p384 = scmp.lt.s32.totalorder %s23, 1
      %s385 = scalar_select %p384, %s23, 1
      %p386 = scmp.lt.s32.totalorder %s24, 0
      %s387 = scalar_select %p386, %s24, 0
      %s388 = sadd.s32 %s387, %s385
      %s389 = smul.addr %s388, 2
      %s390 = scalar_lea.vmem %s6, %s389
      %p391 = scmp.lt.s32.totalorder %s23, 1
      %s392 = scalar_select %p391, %s23, 1
      %p393 = scmp.lt.s32.totalorder %s24, 0
      %s394 = scalar_select %p393, %s24, 0
      %s395 = sadd.s32 %s394, %s392
      %s396 = smul.addr %s395, 2
      %s397 = scalar_lea.vmem %s7, %s396
      %v398 = vld [vmem:[%s3] sm:$0xff]
      %v399 = vld [vmem:[%s3 + $0x8] sm:$0xff]
      %v400 = vld [vmem:[%s3 + $0x10] sm:$0xff]
      %v401 = vld [vmem:[%s3 + $0x18] sm:$0xff]
      %v402 = vld [vmem:[%s3 + $0x20] sm:$0xff]
      %v403 = vld [vmem:[%s3 + $0x28] sm:$0xff]
      %v404 = vld [vmem:[%s3 + $0x30] sm:$0xff]
      %v405 = vld [vmem:[%s3 + $0x38] sm:$0xff]
      %v406 = vld [vmem:[%s3 + $0x40] sm:$0xff]
      %v407 = vld [vmem:[%s3 + $0x48] sm:$0xff]
      %v408 = vld [vmem:[%s3 + $0x50] sm:$0xff]
      %v409 = vld [vmem:[%s3 + $0x58] sm:$0xff]
      %v410 = vld [vmem:[%s3 + $0x60] sm:$0xff]
      %v411 = vld [vmem:[%s3 + $0x68] sm:$0xff]
      %v412 = vld [vmem:[%s3 + $0x70] sm:$0xff]
      %v413 = vld [vmem:[%s3 + $0x78] sm:$0xff]
      %v414 = vld [vmem:[%s4] sm:$0xff]
      %v415 = vld [vmem:[%s4 + $0x8] sm:$0xff]
      %v416 = vld [vmem:[%s4 + $0x10] sm:$0xff]
      %v417 = vld [vmem:[%s4 + $0x18] sm:$0xff]
      %v418 = vld [vmem:[%s4 + $0x20] sm:$0xff]
      %v419 = vld [vmem:[%s4 + $0x28] sm:$0xff]
      %v420 = vld [vmem:[%s4 + $0x30] sm:$0xff]
      %v421 = vld [vmem:[%s4 + $0x38] sm:$0xff]
      %v422 = vld [vmem:[%s4 + $0x40] sm:$0xff]
      %v423 = vld [vmem:[%s4 + $0x48] sm:$0xff]
      %v424 = vld [vmem:[%s4 + $0x50] sm:$0xff]
      %v425 = vld [vmem:[%s4 + $0x58] sm:$0xff]
      %v426 = vld [vmem:[%s4 + $0x60] sm:$0xff]
      %v427 = vld [vmem:[%s4 + $0x68] sm:$0xff]
      %v428 = vld [vmem:[%s4 + $0x70] sm:$0xff]
      %v429 = vld [vmem:[%s4 + $0x78] sm:$0xff]
      %v430 = vld [vmem:[%s362] sm:$0xff]
      %431 = vmatpush.msra.mxu0 %v413
      %432 = vmatpush.msra.mxu0 %v412
      %433 = vmatpush.msra.mxu0 %v411
      %434 = vmatpush.msra.mxu0 %v410
      %435 = vmatpush.msra.mxu0 %v409
      %436 = vmatpush.msra.mxu0 %v408
      %437 = vmatpush.msra.mxu0 %v407
      %438 = vmatpush.msra.mxu0 %v406
      %439 = vmatpush.msra.mxu0 %v405
      %440 = vmatpush.msra.mxu0 %v404
      %441 = vmatpush.msra.mxu0 %v403
      %442 = vmatpush.msra.mxu0 %v402
      %443 = vmatpush.msra.mxu0 %v401
      %444 = vmatpush.msra.mxu0 %v400
      %445 = vmatpush.msra.mxu0 %v399
      %446 = vmatpush.msra.mxu0 %v398
      %447 = vmatmul.f32.gmra.mxu0 %v430
      %v448 = vpop.f32.mrf.mxu0
      %v449 = vadd.f32 128.0, %v448
      %450 = vdwg.mxu0
      %451 = vst [vmem:[%s383] sm:$0xff] %v449
      %v452 = vld [vmem:[%s369] sm:$0x3]
      %453 = vmatpush.msra.mxu0 %v429
      %454 = vmatpush.msra.mxu0 %v428
      %455 = vmatpush.msra.mxu0 %v427
      %456 = vmatpush.msra.mxu0 %v426
      %457 = vmatpush.msra.mxu0 %v425
      %458 = vmatpush.msra.mxu0 %v424
      %459 = vmatpush.msra.mxu0 %v423
      %460 = vmatpush.msra.mxu0 %v422
      %461 = vmatpush.msra.mxu0 %v421
      %462 = vmatpush.msra.mxu0 %v420
      %463 = vmatpush.msra.mxu0 %v419
      %464 = vmatpush.msra.mxu0 %v418
      %465 = vmatpush.msra.mxu0 %v417
      %466 = vmatpush.msra.mxu0 %v416
      %467 = vmatpush.msra.mxu0 %v415
      %468 = vmatpush.msra.mxu0 %v414
      %469 = vmatmul.f32.gmra.mxu0 %v452
      %v470 = vpop.f32.mrf.mxu0
      %v471 = vadd.f32 128.0, %v470
      %472 = vdwg.mxu0
      %473 = vst [vmem:[%s390] sm:$0x3] %v471
      %v474 = vld [vmem:[%s376] sm:$0x3]
      %475 = vmatpush.msra.mxu0 %v429
      %476 = vmatpush.msra.mxu0 %v428
      %477 = vmatpush.msra.mxu0 %v427
      %478 = vmatpush.msra.mxu0 %v426
      %479 = vmatpush.msra.mxu0 %v425
      %480 = vmatpush.msra.mxu0 %v424
      %481 = vmatpush.msra.mxu0 %v423
      %482 = vmatpush.msra.mxu0 %v422
      %483 = vmatpush.msra.mxu0 %v421
      %484 = vmatpush.msra.mxu0 %v420
      %485 = vmatpush.msra.mxu0 %v419
      %486 = vmatpush.msra.mxu0 %v418
      %487 = vmatpush.msra.mxu0 %v417
      %488 = vmatpush.msra.mxu0 %v416
      %489 = vmatpush.msra.mxu0 %v415
      %490 = vmatpush.msra.mxu0 %v414
      %491 = vmatmul.f32.gmra.mxu0 %v474
      %v492 = vpop.f32.mrf.mxu0
      %v493 = vadd.f32 128.0, %v492
      %494 = vdwg.mxu0
      %495 = vst [vmem:[%s397] sm:$0x3] %v493
      %p496 = scmp.lt.s32.totalorder %s23, 1
      %s497 = scalar_select %p496, %s23, 1
      %p498 = scmp.lt.s32.totalorder %s24, 0
      %s499 = scalar_select %p498, %s24, 0
      %s500 = sadd.s32 %s499, %s497
      %s501 = smul.addr %s500, 8
      %s502 = scalar_lea.vmem %s5, %s501
      %p503 = scmp.lt.s32.totalorder %s23, 1
      %s504 = scalar_select %p503, %s23, 1
      %p505 = scmp.lt.s32.totalorder %s24, 0
      %s506 = scalar_select %p505, %s24, 0
      %s507 = sadd.s32 %s506, %s504
      %s508 = smul.addr %s507, 2
      %s509 = scalar_lea.vmem %s6, %s508
      %p510 = scmp.lt.s32.totalorder %s23, 1
      %s511 = scalar_select %p510, %s23, 1
      %p512 = scmp.lt.s32.totalorder %s24, 0
      %s513 = scalar_select %p512, %s24, 0
      %s514 = sadd.s32 %s513, %s511
      %s515 = smul.addr %s514, 2
      %s516 = scalar_lea.vmem %s7, %s515
      // Predicated region
      $region41: #{decompress_jpeg.2} parent=39 // pred_check
        %p517 = pneg %p177
      $region42: #{decompress_jpeg.2} parent=39 // pred_check_branch
        %519 = sbr.rel (%p517) target = $region44
      $region43: #{decompress_jpeg.2} parent=39 // pred_region
        _
      $region44: #{decompress_jpeg.2} parent=39 // pred_fallthru
        _
      // Predicated region
      $region45: #{decompress_jpeg.2} parent=39 // pred_check
        %p520 = pneg %p205
      $region46: #{decompress_jpeg.2} parent=39 // pred_check_branch
        %522 = sbr.rel (%p520) target = $region48
      $region47: #{decompress_jpeg.2} parent=39 // pred_region
        _
      $region48: #{decompress_jpeg.2} parent=39 // pred_fallthru
        _
      // Predicated region
      $region49: #{decompress_jpeg.2} parent=39 // pred_check
        %p523 = pneg %p233
      $region50: #{decompress_jpeg.2} parent=39 // pred_check_branch
        %525 = sbr.rel (%p523) target = $region52
      $region51: #{decompress_jpeg.2} parent=39 // pred_region
        _
      $region52: #{decompress_jpeg.2} parent=39 // pred_fallthru
        _
    $region40: #{decompress_jpeg.2} parent=5 // pred_fallthru
      _
    %p526 = scmp.le.s32.totalorder 2, %s14
    // Predicated region
    $region53: #{decompress_jpeg.2} parent=5 // pred_check
      %p527 = pneg %p526
    $region54: #{decompress_jpeg.2} parent=5 // pred_check_branch
      %529 = sbr.rel (%p527) target = $region56
    $region55: #{decompress_jpeg.2} parent=5 // pred_region
      %s530 = ssub.s32 %s14, 2
      // Predicated region
      $region57: #{decompress_jpeg.2} parent=55 // pred_check
        %p531 = pneg %p183
      $region58: #{decompress_jpeg.2} parent=55 // pred_check_branch
        %533 = sbr.rel (%p531) target = $region60
      $region59: #{decompress_jpeg.2} parent=55 // pred_region
        %p534 = scmp.lt.s32.totalorder %s25, 1
        %s535 = scalar_select %p534, %s25, 1
        %p536 = scmp.lt.s32.totalorder %s26, 0
        %s537 = scalar_select %p536, %s26, 0
        %s538 = sadd.s32 %s537, %s535
        %s539 = smul.addr %s538, 8
        %s540 = scalar_lea.vmem %s5, %s539
      $region60: #{decompress_jpeg.2} parent=55 // pred_fallthru
        _
      // Predicated region
      $region61: #{decompress_jpeg.2} parent=55 // pred_check
        %p541 = pneg %p211
      $region62: #{decompress_jpeg.2} parent=55 // pred_check_branch
        %543 = sbr.rel (%p541) target = $region64
      $region63: #{decompress_jpeg.2} parent=55 // pred_region
        %p544 = scmp.lt.s32.totalorder %s25, 1
        %s545 = scalar_select %p544, %s25, 1
        %p546 = scmp.lt.s32.totalorder %s26, 0
        %s547 = scalar_select %p546, %s26, 0
        %s548 = sadd.s32 %s547, %s545
        %s549 = smul.addr %s548, 2
        %s550 = scalar_lea.vmem %s6, %s549
      $region64: #{decompress_jpeg.2} parent=55 // pred_fallthru
        _
      // Predicated region
      $region65: #{decompress_jpeg.2} parent=55 // pred_check
        %p551 = pneg %p239
      $region66: #{decompress_jpeg.2} parent=55 // pred_check_branch
        %553 = sbr.rel (%p551) target = $region68
      $region67: #{decompress_jpeg.2} parent=55 // pred_region
        %p554 = scmp.lt.s32.totalorder %s25, 1
        %s555 = scalar_select %p554, %s25, 1
        %p556 = scmp.lt.s32.totalorder %s26, 0
        %s557 = scalar_select %p556, %s26, 0
        %s558 = sadd.s32 %s557, %s555
        %s559 = smul.addr %s558, 2
        %s560 = scalar_lea.vmem %s7, %s559
      $region68: #{decompress_jpeg.2} parent=55 // pred_fallthru
        _
    $region56: #{decompress_jpeg.2} parent=5 // pred_fallthru
      _
  $region6: #{decompress_jpeg.2} parent=0 // loop_footer
    %s18 = sadd.s32 1, %s14
  $region7: #{decompress_jpeg.2} parent=0 // loop_footer_branch
    %13 = sbr.rel target = $region3
  $region8: #{decompress_jpeg.2} parent=0 // loop_exit
    _

</llo_original>
